<compile_context>
chip_gen: v6e
topology: v6e:2x2x1
jax: 0.10.0
libtpu: 0.0.40
codegen_flags: <defaults>
</compile_context>

<pallas_src>
import functools

import jax
import jax.numpy as jnp
from jax import lax
from jax.experimental import pallas as pl
from jax.experimental.pallas import tpu as pltpu


def _ae_kernel(x_ref, w1_ref, b1_ref, w2p_ref, b2p_ref, b3_ref, b4_ref,
               proj_ref, xhat_ref):
    """One batch tile of the tied-weight autoencoder forward pass.

    w2p / b2p are the en_linear2 weight/bias zero-padded along the H2 axis to a
    lane-dense width (multiple of 128).  All matmuls accumulate in f32 via
    preferred_element_type; operands go to the MXU in their native dtype.
    """
    x = x_ref[...]                              # (TB, D)
    w1 = w1_ref[...]                            # (H1, D)
    w2p = w2p_ref[...]                          # (H2p, H1)  zero rows beyond H2
    b1 = b1_ref[...].astype(jnp.float32)        # (1, H1)
    b2p = b2p_ref[...].astype(jnp.float32)      # (1, H2p)   zero beyond H2
    b3 = b3_ref[...].astype(jnp.float32)        # (1, H1)
    b4 = b4_ref[...].astype(jnp.float32)        # (1, D)

    # A @ B.T : contract last dim of A with last dim of B (no explicit transpose).
    dn_t = (((1,), (1,)), ((), ()))

    # encoder
    h = lax.dot_general(x, w1, dn_t, preferred_element_type=jnp.float32) + b1
    h = jnp.maximum(h, 0.0)                     # (TB, H1)  f32

    proj = lax.dot_general(h.astype(w2p.dtype), w2p, dn_t,
                           preferred_element_type=jnp.float32) + b2p
    proj = jnp.maximum(proj, 0.0)               # (TB, H2p); padded cols are exactly 0

    # decoder (tied weights): proj @ W2, then d @ W1
    d = jnp.dot(proj.astype(w2p.dtype), w2p,
                preferred_element_type=jnp.float32) + b3
    d = jnp.maximum(d, 0.0)                     # (TB, H1)

    logits = jnp.dot(d.astype(w1.dtype), w1,
                     preferred_element_type=jnp.float32) + b4   # (TB, D)
    xhat = jax.nn.sigmoid(logits)

    proj_ref[...] = proj.astype(proj_ref.dtype)
    xhat_ref[...] = xhat.astype(xhat_ref.dtype)


@functools.partial(jax.jit, static_argnames=("tile_b",))
def autoencoder_forward(x, w1, b1, w2, b2, b3, b4, *, tile_b=128):
    """Whole forward pass in a single pallas_call, tiled over the batch.

    Returns (projection, Xhat), matching the PyTorch module.
    """
    B, D = x.shape
    H1 = w1.shape[0]
    H2 = w2.shape[0]

    tile_b = min(tile_b, B)
    assert B % tile_b == 0, "batch must be divisible by tile_b"
    assert tile_b % 8 == 0, "tile_b must be a multiple of 8 (sublane)"

    # Lane-pad the projection axis (H2) to a multiple of 128: lane-dense stores
    # and full MXU lane/contraction width for the W2 matmuls.  Exact (see kernel).
    H2p = pl.cdiv(H2, 128) * 128
    w2p = jnp.pad(w2, ((0, H2p - H2), (0, 0)))
    b2p = jnp.pad(b2, (0, H2p - H2)).reshape(1, H2p)

    # biases as (1, dim) rows for 2-D VMEM residency
    b1r = b1.reshape(1, H1)
    b3r = b3.reshape(1, H1)
    b4r = b4.reshape(1, D)

    grid = (B // tile_b,)
    full = lambda shape: pl.BlockSpec(shape, lambda i: (0, 0))

    flops = 2 * B * (D * H1 + H1 * H2p + H2p * H1 + H1 * D)
    bytes_accessed = 4 * (x.size + w1.size + w2p.size + H1 + H2p + H1 + D
                          + B * H2p + B * D)

    proj_pad, xhat = pl.pallas_call(
        _ae_kernel,
        out_shape=(
            jax.ShapeDtypeStruct((B, H2p), x.dtype),
            jax.ShapeDtypeStruct((B, D), x.dtype),
        ),
        grid_spec=pltpu.PrefetchScalarGridSpec(
            num_scalar_prefetch=0,
            grid=grid,
            in_specs=[
                pl.BlockSpec((tile_b, D), lambda i: (i, 0)),   # X tile
                full((H1, D)),                                 # W1 (whole)
                full((1, H1)),                                 # b1
                full((H2p, H1)),                               # W2 (lane-padded)
                full((1, H2p)),                                # b2 (lane-padded)
                full((1, H1)),                                 # b3
                full((1, D)),                                  # b4
            ],
            out_specs=[
                pl.BlockSpec((tile_b, H2p), lambda i: (i, 0)),  # projection (padded)
                pl.BlockSpec((tile_b, D), lambda i: (i, 0)),    # Xhat
            ],
        ),
        compiler_params=pltpu.CompilerParams(
            dimension_semantics=("parallel",)),
        cost_estimate=pl.CostEstimate(
            flops=flops,
            transcendentals=B * D,           # sigmoid exp
            bytes_accessed=bytes_accessed),
    )(x, w1, b1r, w2p, b2p, b3r, b4r)

    # strip the lane padding off the projection outside the kernel (cheap XLA slice)
    return proj_pad[:, :H2], xhat


def _reference_forward(x, w1, b1, w2, b2, b3, b4):
    h = jnp.maximum(x @ w1.T + b1, 0.0)
    proj = jnp.maximum(h @ w2.T + b2, 0.0)
    d = jnp.maximum(proj @ w2 + b3, 0.0)
    xhat = jax.nn.sigmoid(d @ w1 + b4)
    return proj, xhat


if __name__ == "__main__":
    # Shapes consistent with the module: Linear stack on flat features.
    # Batch 256 with tile_b=128 -> 2 MXU-sized grid steps (both v7x TCs busy).
    B, INPUT_DIM, HIDDEN1, HIDDEN2 = 256, 256, 128, 64

    key = jax.random.PRNGKey(0)
    kx, k1, k2, k3, k4, k5, k6 = jax.random.split(key, 7)

    x = jax.random.uniform(kx, (B, INPUT_DIM), dtype=jnp.float32)

    # Deterministic PyTorch-style uniform(-1/sqrt(fan_in), 1/sqrt(fan_in)) init.
    def lin_init(kw, kb, out_dim, in_dim):
        bound = 1.0 / jnp.sqrt(jnp.float32(in_dim))
        w = jax.random.uniform(kw, (out_dim, in_dim), jnp.float32, -bound, bound)
        b = jax.random.uniform(kb, (out_dim,), jnp.float32, -bound, bound)
        return w, b

    w1, b1 = lin_init(k1, k2, HIDDEN1, INPUT_DIM)          # en_linear1
    w2, b2 = lin_init(k3, k4, HIDDEN2, HIDDEN1)            # en_linear2
    # decoder biases (decoder weights are tied: W2.T and W1.T)
    k5a, k5b = jax.random.split(k5)
    k6a, k6b = jax.random.split(k6)
    _, b3 = lin_init(k5a, k5b, HIDDEN1, HIDDEN2)           # de_linear1 bias
    _, b4 = lin_init(k6a, k6b, INPUT_DIM, HIDDEN1)         # de_linear2 bias

    proj, xhat = autoencoder_forward(x, w1, b1, w2, b2, b3, b4, tile_b=128)
    jax.block_until_ready((proj, xhat))

    # correctness check against pure-JAX reference
    proj_ref, xhat_ref = _reference_forward(x, w1, b1, w2, b2, b3, b4)
    assert proj.shape == (B, HIDDEN2) and xhat.shape == (B, INPUT_DIM)
    assert jnp.allclose(proj, proj_ref, atol=2e-5, rtol=2e-5)
    assert jnp.allclose(xhat, xhat_ref, atol=2e-5, rtol=2e-5)

    print("KERNEL_OK")
</pallas_src>

<mosaic_0001>
module attributes {stable_mosaic.version = 11 : i64} {
  func.func @_ae_kernel(%arg0: i32, %arg1: memref<128x256xf32, #tpu.memory_space<vmem>>, %arg2: memref<128x256xf32, #tpu.memory_space<vmem>>, %arg3: memref<1x128xf32, #tpu.memory_space<vmem>>, %arg4: memref<128x128xf32, #tpu.memory_space<vmem>>, %arg5: memref<1x128xf32, #tpu.memory_space<vmem>>, %arg6: memref<1x128xf32, #tpu.memory_space<vmem>>, %arg7: memref<1x256xf32, #tpu.memory_space<vmem>>, %arg8: memref<128x128xf32, #tpu.memory_space<vmem>>, %arg9: memref<128x256xf32, #tpu.memory_space<vmem>>) attributes {dimension_semantics = [#tpu.dimension_semantics<parallel>], iteration_bounds = array<i64: 2>, scalar_prefetch = 0 : i64, scratch_operands = 0 : i64, tpu.core_type = #tpu.core_type<tc>, window_params = [{transform_indices = @transform_0, window_bounds = array<i64: 128, 256>}, {pipeline_mode = #tpu.pipeline_mode<synchronous>, transform_indices = @transform_1, window_bounds = array<i64: 128, 256>}, {pipeline_mode = #tpu.pipeline_mode<synchronous>, transform_indices = @transform_2, window_bounds = array<i64: 1, 128>}, {pipeline_mode = #tpu.pipeline_mode<synchronous>, transform_indices = @transform_3, window_bounds = array<i64: 128, 128>}, {pipeline_mode = #tpu.pipeline_mode<synchronous>, transform_indices = @transform_4, window_bounds = array<i64: 1, 128>}, {pipeline_mode = #tpu.pipeline_mode<synchronous>, transform_indices = @transform_5, window_bounds = array<i64: 1, 128>}, {pipeline_mode = #tpu.pipeline_mode<synchronous>, transform_indices = @transform_6, window_bounds = array<i64: 1, 256>}, {transform_indices = @transform_7, window_bounds = array<i64: 128, 128>}, {transform_indices = @transform_8, window_bounds = array<i64: 128, 256>}]} {
    %c0 = arith.constant 0 : index
    %c0_0 = arith.constant 0 : index
    %0 = vector.load %arg1[%c0, %c0_0] : memref<128x256xf32, #tpu.memory_space<vmem>>, vector<128x256xf32>
    %c0_1 = arith.constant 0 : index
    %c0_2 = arith.constant 0 : index
    %1 = vector.load %arg2[%c0_1, %c0_2] : memref<128x256xf32, #tpu.memory_space<vmem>>, vector<128x256xf32>
    %c0_3 = arith.constant 0 : index
    %c0_4 = arith.constant 0 : index
    %2 = vector.load %arg4[%c0_3, %c0_4] : memref<128x128xf32, #tpu.memory_space<vmem>>, vector<128x128xf32>
    %c0_5 = arith.constant 0 : index
    %c0_6 = arith.constant 0 : index
    %3 = vector.load %arg3[%c0_5, %c0_6] : memref<1x128xf32, #tpu.memory_space<vmem>>, vector<1x128xf32>
    %c0_7 = arith.constant 0 : index
    %c0_8 = arith.constant 0 : index
    %4 = vector.load %arg5[%c0_7, %c0_8] : memref<1x128xf32, #tpu.memory_space<vmem>>, vector<1x128xf32>
    %c0_9 = arith.constant 0 : index
    %c0_10 = arith.constant 0 : index
    %5 = vector.load %arg6[%c0_9, %c0_10] : memref<1x128xf32, #tpu.memory_space<vmem>>, vector<1x128xf32>
    %c0_11 = arith.constant 0 : index
    %c0_12 = arith.constant 0 : index
    %6 = vector.load %arg7[%c0_11, %c0_12] : memref<1x256xf32, #tpu.memory_space<vmem>>, vector<1x256xf32>
    %cst = arith.constant dense<0.000000e+00> : vector<128x128xf32>
    %7 = tpu.matmul %0, %1, %cst {dimension_numbers = #tpu.dot_dimension_numbers<[1], [1], [0], [0], [0, 0, 1, 0], [], []>} : vector<128x256xf32>, vector<128x256xf32>, vector<128x128xf32> -> vector<128x128xf32>
    %8 = vector.broadcast %3 : vector<1x128xf32> to vector<128x128xf32>
    %9 = arith.addf %7, %8 : vector<128x128xf32>
    %cst_13 = arith.constant 0.000000e+00 : f32
    %10 = vector.broadcast %cst_13 : f32 to vector<128x128xf32>
    %11 = arith.maximumf %9, %10 : vector<128x128xf32>
    %cst_14 = arith.constant dense<0.000000e+00> : vector<128x128xf32>
    %12 = tpu.matmul %11, %2, %cst_14 {dimension_numbers = #tpu.dot_dimension_numbers<[1], [1], [0], [0], [0, 0, 1, 0], [], []>} : vector<128x128xf32>, vector<128x128xf32>, vector<128x128xf32> -> vector<128x128xf32>
    %13 = vector.broadcast %4 : vector<1x128xf32> to vector<128x128xf32>
    %14 = arith.addf %12, %13 : vector<128x128xf32>
    %cst_15 = arith.constant 0.000000e+00 : f32
    %15 = vector.broadcast %cst_15 : f32 to vector<128x128xf32>
    %16 = arith.maximumf %14, %15 : vector<128x128xf32>
    %cst_16 = arith.constant dense<0.000000e+00> : vector<128x128xf32>
    %17 = tpu.matmul %16, %2, %cst_16 {dimension_numbers = #tpu.dot_dimension_numbers<[1], [0], [0], [1], [0, 0, 1, 1], [], []>} : vector<128x128xf32>, vector<128x128xf32>, vector<128x128xf32> -> vector<128x128xf32>
    %18 = vector.broadcast %5 : vector<1x128xf32> to vector<128x128xf32>
    %19 = arith.addf %17, %18 : vector<128x128xf32>
    %cst_17 = arith.constant 0.000000e+00 : f32
    %20 = vector.broadcast %cst_17 : f32 to vector<128x128xf32>
    %21 = arith.maximumf %19, %20 : vector<128x128xf32>
    %cst_18 = arith.constant dense<0.000000e+00> : vector<128x256xf32>
    %22 = tpu.matmul %21, %1, %cst_18 {dimension_numbers = #tpu.dot_dimension_numbers<[1], [0], [0], [1], [0, 0, 1, 1], [], []>} : vector<128x128xf32>, vector<128x256xf32>, vector<128x256xf32> -> vector<128x256xf32>
    %23 = vector.broadcast %6 : vector<1x256xf32> to vector<128x256xf32>
    %24 = arith.addf %22, %23 : vector<128x256xf32>
    %25 = arith.negf %24 : vector<128x256xf32>
    %26 = math.exp %25 : vector<128x256xf32>
    %cst_19 = arith.constant 1.000000e+00 : f32
    %27 = vector.broadcast %cst_19 : f32 to vector<128x256xf32>
    %28 = arith.addf %27, %26 : vector<128x256xf32>
    %29 = arith.divf %27, %28 : vector<128x256xf32>
    %c0_20 = arith.constant 0 : index
    %c0_21 = arith.constant 0 : index
    %30 = vector.load %arg8[%c0_20, %c0_21] : memref<128x128xf32, #tpu.memory_space<vmem>>, vector<128x128xf32>
    tpu.vector_store %arg8[%c0_20, %c0_21], %16 {strides = array<i32>} : memref<128x128xf32, #tpu.memory_space<vmem>>, vector<128x128xf32>,
    %c0_22 = arith.constant 0 : index
    %c0_23 = arith.constant 0 : index
    %31 = vector.load %arg9[%c0_22, %c0_23] : memref<128x256xf32, #tpu.memory_space<vmem>>, vector<128x256xf32>
    tpu.vector_store %arg9[%c0_22, %c0_23], %29 {strides = array<i32>} : memref<128x256xf32, #tpu.memory_space<vmem>>, vector<128x256xf32>,
    return
  }
  func.func @transform_0(%arg0: i32) -> (i32, i32) {
    %c0_i32 = arith.constant 0 : i32
    %c0_i32_0 = arith.constant 0 : i32
    return %arg0, %c0_i32 : i32, i32
  }
  func.func @transform_1(%arg0: i32) -> (i32, i32) {
    %c0_i32 = arith.constant 0 : i32
    %c0_i32_0 = arith.constant 0 : i32
    %c0_i32_1 = arith.constant 0 : i32
    return %c0_i32, %c0_i32_0 : i32, i32
  }
  func.func @transform_2(%arg0: i32) -> (i32, i32) {
    %c0_i32 = arith.constant 0 : i32
    %c0_i32_0 = arith.constant 0 : i32
    %c0_i32_1 = arith.constant 0 : i32
    return %c0_i32, %c0_i32_0 : i32, i32
  }
  func.func @transform_3(%arg0: i32) -> (i32, i32) {
    %c0_i32 = arith.constant 0 : i32
    %c0_i32_0 = arith.constant 0 : i32
    %c0_i32_1 = arith.constant 0 : i32
    return %c0_i32, %c0_i32_0 : i32, i32
  }
  func.func @transform_4(%arg0: i32) -> (i32, i32) {
    %c0_i32 = arith.constant 0 : i32
    %c0_i32_0 = arith.constant 0 : i32
    %c0_i32_1 = arith.constant 0 : i32
    return %c0_i32, %c0_i32_0 : i32, i32
  }
  func.func @transform_5(%arg0: i32) -> (i32, i32) {
    %c0_i32 = arith.constant 0 : i32
    %c0_i32_0 = arith.constant 0 : i32
    %c0_i32_1 = arith.constant 0 : i32
    return %c0_i32, %c0_i32_0 : i32, i32
  }
  func.func @transform_6(%arg0: i32) -> (i32, i32) {
    %c0_i32 = arith.constant 0 : i32
    %c0_i32_0 = arith.constant 0 : i32
    %c0_i32_1 = arith.constant 0 : i32
    return %c0_i32, %c0_i32_0 : i32, i32
  }
  func.func @transform_7(%arg0: i32) -> (i32, i32) {
    %c0_i32 = arith.constant 0 : i32
    %c0_i32_0 = arith.constant 0 : i32
    return %arg0, %c0_i32 : i32, i32
  }
  func.func @transform_8(%arg0: i32) -> (i32, i32) {
    %c0_i32 = arith.constant 0 : i32
    %c0_i32_0 = arith.constant 0 : i32
    return %arg0, %c0_i32 : i32, i32
  }
}

</mosaic_0001>

<llo_original>
// kernel: autoencoder_forward.1
$region0: #{autoencoder_forward.1}
  #allocation0 [shape = 'u32[]', space=smem, size = 0x4, offset = 0x4, fixed_abs, tag = 'smem constant byte address 0x4 - core index']
  #allocation1 [shape = 'u32[144,128]{1,0:T(1,128)}', space=vmem, size = 0x12000, scoped, tag = 'internal scratch']
  %s0 = inlined_call_operand.hbm [shape: f32[256,256], index: 0, kind: input, shape index: {}]
  %s1 = inlined_call_operand.hbm [shape: f32[128,256], index: 1, kind: input, shape index: {}]
  %s2 = inlined_call_operand.vmem [shape: f32[1,128], index: 2, kind: input, shape index: {}]
  %s3 = inlined_call_operand.vmem [shape: f32[128,128], index: 3, kind: input, shape index: {}]
  %s4 = inlined_call_operand.vmem [shape: f32[1,128], index: 4, kind: input, shape index: {}]
  %s5 = inlined_call_operand.vmem [shape: f32[1,128], index: 5, kind: input, shape index: {}]
  %s6 = inlined_call_operand.vmem [shape: f32[1,256], index: 6, kind: input, shape index: {}]
  %s7 = inlined_call_operand.vmem [shape: f32[256,128], index: 7, kind: output, shape index: {0}]
  %s8 = inlined_call_operand.hbm [shape: f32[256,256], index: 8, kind: output, shape index: {1}]
  %9 = xla_tuple %s7, %s8
  %s10 = sld [smem:[#allocation0]]
  $region77: #{autoencoder_forward.1} parent=0
    _
  %s12 = ssub.s32 1, %s10
  %s13 = scalar_select 0, %s12, %s10
  $region1: #{autoencoder_forward.1} parent=0
    #allocation2 [shape = 'u8[262144]{0}', space=vmem, size = 0x40000, scoped, tag = 'input window, operand 0']
    #allocation3 [shape = 's32[2]{0}', space=sflag, size = 0x8, scoped, tag = 'scoped memory for autoencoder_forward.1']
    #allocation4 [shape = 's32[2]{0}', space=sflag, size = 0x8, scoped, tag = 'scoped memory for autoencoder_forward.1']
    #allocation5 [shape = 'u8[131072]{0}', space=vmem, size = 0x20000, scoped, tag = 'input window, operand 1, single buffered']
    #allocation6 [shape = 's32[1]{0}', space=sflag, size = 0x4, scoped, tag = 'scoped memory for autoencoder_forward.1']
    #allocation7 [shape = 'u8[262144]{0}', space=vmem, size = 0x40000, scoped, tag = 'output window, operand 1']
    %14 = vsyncpa [#allocation3], 0
    %s15 = scalar_lea.sflag [#allocation3], 1
    %16 = vsyncpa %s15, 0
    %17 = vsyncpa [#allocation6], 0
    %18 = vsyncpa [#allocation4], 0
    %s19 = scalar_lea.sflag [#allocation4], 1
    %20 = vsyncpa %s19, 0
    loop: start=0, step=1, limit=4
    $region2: #{autoencoder_forward.1} parent=1 // loop_pre_header
      _
    $region3: #{autoencoder_forward.1} parent=1 // loop_header
      %s22 = sphi 0, %s26
      %p23 = scmp.ge.s32.totalorder %s22, 4
      %s32 = sphi 0, %s34
      %s35 = sphi 0, %s32
      %s36 = sphi 0, %s35
      %s52 = sphi 0, %s36
      %s56 = sphi 0, %s56
      %s58 = sphi 0, %s56
      %s59 = sphi 0, %s58
      %s73 = sphi 0, %s59
      %s77 = sphi 0, %s77
      %s79 = sphi 0, %s77
      %s80 = sphi 0, %s79
      %s94 = sphi 0, %s80
      %s98 = sphi 0, %s98
      %s100 = sphi 0, %s98
      %s101 = sphi 0, %s100
      %s115 = sphi 0, %s101
      %s119 = sphi 0, %s119
      %s121 = sphi 0, %s119
      %s122 = sphi 0, %s121
      %s136 = sphi 0, %s122
      %s140 = sphi 0, %s140
      %s142 = sphi 0, %s140
      %s143 = sphi 0, %s142
      %s157 = sphi 0, %s143
      %s161 = sphi 0, %s161
      %s163 = sphi 0, %s161
      %s164 = sphi 0, %s163
      %s178 = sphi 0, %s164
      %s184 = sphi 0, %s186
      %s187 = sphi 0, %s184
      %s188 = sphi 0, %s187
      %s204 = sphi 0, %s188
      %s210 = sphi 0, %s212
      %s213 = sphi 0, %s210
      %s214 = sphi 0, %s213
      %s230 = sphi 0, %s214
    $region4: #{autoencoder_forward.1} parent=1 // loop_header_branch
      %25 = sbr.rel (%p23) target = $region8
    $region5: #{autoencoder_forward.1} parent=1 // loop_body
      %s27 = ssub.s32 %s22, 1
      %s28 = ssub.s32 %s22, 2
      %s29 = sadd.s32 %s22, 1
      %s30 = ssub.s32 %s22, %s29
      %p31 = scmp.eq.s32.totalorder %s30, 0
      %s33 = sadd.s32 %s32, 1
      %s34 = scalar_select %p31, %s32, %s33
      %p37 = pneg %p31
      %p38 = scmp.eq.s32.totalorder %s22, 1
      %p39 = por %p37, %p38
      %p40 = scmp.ne.s32.totalorder %s32, %s35
      %p41 = scmp.eq.s32.totalorder %s22, 0
      %p42 = por %p40, %p41
      %p43 = scmp.ne.s32.totalorder %s32, %s35
      %p44 = scmp.eq.s32.totalorder %s27, 1
      %p45 = por %p43, %p44
      %p46 = scmp.ne.s32.totalorder %s35, %s36
      %p47 = scmp.eq.s32.totalorder %s27, 0
      %p48 = por %p46, %p47
      %p49 = scmp.ne.s32.totalorder %s35, %s36
      %p50 = scmp.eq.s32.totalorder %s28, 1
      %p51 = por %p49, %p50
      %p53 = scmp.ne.s32.totalorder %s36, %s52
      %p54 = scmp.eq.s32.totalorder %s28, 0
      %p55 = por %p53, %p54
      %s57 = sadd.s32 %s56, 1
      %p60 = scmp.eq.s32.totalorder %s22, 1
      %p61 = scmp.ne.s32.totalorder %s56, %s58
      %p62 = scmp.eq.s32.totalorder %s22, 0
      %p63 = por %p61, %p62
      %p64 = scmp.ne.s32.totalorder %s56, %s58
      %p65 = scmp.eq.s32.totalorder %s27, 1
      %p66 = por %p64, %p65
      %p67 = scmp.ne.s32.totalorder %s58, %s59
      %p68 = scmp.eq.s32.totalorder %s27, 0
      %p69 = por %p67, %p68
      %p70 = scmp.ne.s32.totalorder %s58, %s59
      %p71 = scmp.eq.s32.totalorder %s28, 1
      %p72 = por %p70, %p71
      %p74 = scmp.ne.s32.totalorder %s59, %s73
      %p75 = scmp.eq.s32.totalorder %s28, 0
      %p76 = por %p74, %p75
      %s78 = sadd.s32 %s77, 1
      %p81 = scmp.eq.s32.totalorder %s22, 1
      %p82 = scmp.ne.s32.totalorder %s77, %s79
      %p83 = scmp.eq.s32.totalorder %s22, 0
      %p84 = por %p82, %p83
      %p85 = scmp.ne.s32.totalorder %s77, %s79
      %p86 = scmp.eq.s32.totalorder %s27, 1
      %p87 = por %p85, %p86
      %p88 = scmp.ne.s32.totalorder %s79, %s80
      %p89 = scmp.eq.s32.totalorder %s27, 0
      %p90 = por %p88, %p89
      %p91 = scmp.ne.s32.totalorder %s79, %s80
      %p92 = scmp.eq.s32.totalorder %s28, 1
      %p93 = por %p91, %p92
      %p95 = scmp.ne.s32.totalorder %s80, %s94
      %p96 = scmp.eq.s32.totalorder %s28, 0
      %p97 = por %p95, %p96
      %s99 = sadd.s32 %s98, 1
      %p102 = scmp.eq.s32.totalorder %s22, 1
      %p103 = scmp.ne.s32.totalorder %s98, %s100
      %p104 = scmp.eq.s32.totalorder %s22, 0
      %p105 = por %p103, %p104
      %p106 = scmp.ne.s32.totalorder %s98, %s100
      %p107 = scmp.eq.s32.totalorder %s27, 1
      %p108 = por %p106, %p107
      %p109 = scmp.ne.s32.totalorder %s100, %s101
      %p110 = scmp.eq.s32.totalorder %s27, 0
      %p111 = por %p109, %p110
      %p112 = scmp.ne.s32.totalorder %s100, %s101
      %p113 = scmp.eq.s32.totalorder %s28, 1
      %p114 = por %p112, %p113
      %p116 = scmp.ne.s32.totalorder %s101, %s115
      %p117 = scmp.eq.s32.totalorder %s28, 0
      %p118 = por %p116, %p117
      %s120 = sadd.s32 %s119, 1
      %p123 = scmp.eq.s32.totalorder %s22, 1
      %p124 = scmp.ne.s32.totalorder %s119, %s121
      %p125 = scmp.eq.s32.totalorder %s22, 0
      %p126 = por %p124, %p125
      %p127 = scmp.ne.s32.totalorder %s119, %s121
      %p128 = scmp.eq.s32.totalorder %s27, 1
      %p129 = por %p127, %p128
      %p130 = scmp.ne.s32.totalorder %s121, %s122
      %p131 = scmp.eq.s32.totalorder %s27, 0
      %p132 = por %p130, %p131
      %p133 = scmp.ne.s32.totalorder %s121, %s122
      %p134 = scmp.eq.s32.totalorder %s28, 1
      %p135 = por %p133, %p134
      %p137 = scmp.ne.s32.totalorder %s122, %s136
      %p138 = scmp.eq.s32.totalorder %s28, 0
      %p139 = por %p137, %p138
      %s141 = sadd.s32 %s140, 1
      %p144 = scmp.eq.s32.totalorder %s22, 1
      %p145 = scmp.ne.s32.totalorder %s140, %s142
      %p146 = scmp.eq.s32.totalorder %s22, 0
      %p147 = por %p145, %p146
      %p148 = scmp.ne.s32.totalorder %s140, %s142
      %p149 = scmp.eq.s32.totalorder %s27, 1
      %p150 = por %p148, %p149
      %p151 = scmp.ne.s32.totalorder %s142, %s143
      %p152 = scmp.eq.s32.totalorder %s27, 0
      %p153 = por %p151, %p152
      %p154 = scmp.ne.s32.totalorder %s142, %s143
      %p155 = scmp.eq.s32.totalorder %s28, 1
      %p156 = por %p154, %p155
      %p158 = scmp.ne.s32.totalorder %s143, %s157
      %p159 = scmp.eq.s32.totalorder %s28, 0
      %p160 = por %p158, %p159
      %s162 = sadd.s32 %s161, 1
      %p165 = scmp.eq.s32.totalorder %s22, 1
      %p166 = scmp.ne.s32.totalorder %s161, %s163
      %p167 = scmp.eq.s32.totalorder %s22, 0
      %p168 = por %p166, %p167
      %p169 = scmp.ne.s32.totalorder %s161, %s163
      %p170 = scmp.eq.s32.totalorder %s27, 1
      %p171 = por %p169, %p170
      %p172 = scmp.ne.s32.totalorder %s163, %s164
      %p173 = scmp.eq.s32.totalorder %s27, 0
      %p174 = por %p172, %p173
      %p175 = scmp.ne.s32.totalorder %s163, %s164
      %p176 = scmp.eq.s32.totalorder %s28, 1
      %p177 = por %p175, %p176
      %p179 = scmp.ne.s32.totalorder %s164, %s178
      %p180 = scmp.eq.s32.totalorder %s28, 0
      %p181 = por %p179, %p180
      %s182 = ssub.s32 %s22, %s29
      %p183 = scmp.eq.s32.totalorder %s182, 0
      %s185 = sadd.s32 %s184, 1
      %s186 = scalar_select %p183, %s184, %s185
      %p189 = pneg %p183
      %p190 = scmp.eq.s32.totalorder %s22, 1
      %p191 = por %p189, %p190
      %p192 = scmp.ne.s32.totalorder %s184, %s187
      %p193 = scmp.eq.s32.totalorder %s22, 0
      %p194 = por %p192, %p193
      %p195 = scmp.ne.s32.totalorder %s184, %s187
      %p196 = scmp.eq.s32.totalorder %s27, 1
      %p197 = por %p195, %p196
      %p198 = scmp.ne.s32.totalorder %s187, %s188
      %p199 = scmp.eq.s32.totalorder %s27, 0
      %p200 = por %p198, %p199
      %p201 = scmp.ne.s32.totalorder %s187, %s188
      %p202 = scmp.eq.s32.totalorder %s28, 1
      %p203 = por %p201, %p202
      %p205 = scmp.ne.s32.totalorder %s188, %s204
      %p206 = scmp.eq.s32.totalorder %s28, 0
      %p207 = por %p205, %p206
      %s208 = ssub.s32 %s22, %s29
      %p209 = scmp.eq.s32.totalorder %s208, 0
      %s211 = sadd.s32 %s210, 1
      %s212 = scalar_select %p209, %s210, %s211
      %p215 = pneg %p209
      %p216 = scmp.eq.s32.totalorder %s22, 1
      %p217 = por %p215, %p216
      %p218 = scmp.ne.s32.totalorder %s210, %s213
      %p219 = scmp.eq.s32.totalorder %s22, 0
      %p220 = por %p218, %p219
      %p221 = scmp.ne.s32.totalorder %s210, %s213
      %p222 = scmp.eq.s32.totalorder %s27, 1
      %p223 = por %p221, %p222
      %p224 = scmp.ne.s32.totalorder %s213, %s214
      %p225 = scmp.eq.s32.totalorder %s27, 0
      %p226 = por %p224, %p225
      %p227 = scmp.ne.s32.totalorder %s213, %s214
      %p228 = scmp.eq.s32.totalorder %s28, 1
      %p229 = por %p227, %p228
      %p231 = scmp.ne.s32.totalorder %s214, %s230
      %p232 = scmp.eq.s32.totalorder %s28, 0
      %p233 = por %p231, %p232
      %p234 = scmp.le.s32.totalorder 1, %s22
      %p235 = scmp.lt.s32.totalorder %s22, 3
      %p236 = pnand %p234, %p235
      %p237 = pneg %p236
      // Predicated region
      $region9: #{autoencoder_forward.1} parent=5 // pred_check
        _
      $region10: #{autoencoder_forward.1} parent=5 // pred_check_branch
        %239 = sbr.rel (%p236) target = $region12
      $region11: #{autoencoder_forward.1} parent=5 // pred_region
        %s240 = ssub.s32 %s22, 1
        // Predicated region
        $region13: #{autoencoder_forward.1} parent=11 // pred_check
          %p241 = pneg %p69
        $region14: #{autoencoder_forward.1} parent=11 // pred_check_branch
          %243 = sbr.rel (%p241) target = $region16
        $region15: #{autoencoder_forward.1} parent=11 // pred_region
          %s245 = ssub.s32 4096, 4096
          %246 = vsyncadd [#allocation6], %s245
          %s247 = sshll.u32 [#allocation5], 4
          %s248 = int_to_ptr.vmem [resolvable:$true] %s247
          %253 = dma.hbm_to_vmem [thread:$0]  %s1, 4096, %s248, [#allocation6], 256, 256, 16
        $region16: #{autoencoder_forward.1} parent=11 // pred_fallthru
          _
        // Predicated region
        $region17: #{autoencoder_forward.1} parent=11 // pred_check
          %p254 = pneg %p90
        $region18: #{autoencoder_forward.1} parent=11 // pred_check_branch
          %256 = sbr.rel (%p254) target = $region20
        $region19: #{autoencoder_forward.1} parent=11 // pred_region
          _
        $region20: #{autoencoder_forward.1} parent=11 // pred_fallthru
          _
        // Predicated region
        $region21: #{autoencoder_forward.1} parent=11 // pred_check
          %p257 = pneg %p111
        $region22: #{autoencoder_forward.1} parent=11 // pred_check_branch
          %259 = sbr.rel (%p257) target = $region24
        $region23: #{autoencoder_forward.1} parent=11 // pred_region
          _
        $region24: #{autoencoder_forward.1} parent=11 // pred_fallthru
          _
        // Predicated region
        $region25: #{autoencoder_forward.1} parent=11 // pred_check
          %p260 = pneg %p132
        $region26: #{autoencoder_forward.1} parent=11 // pred_check_branch
          %262 = sbr.rel (%p260) target = $region28
        $region27: #{autoencoder_forward.1} parent=11 // pred_region
          _
        $region28: #{autoencoder_forward.1} parent=11 // pred_fallthru
          _
        // Predicated region
        $region29: #{autoencoder_forward.1} parent=11 // pred_check
          %p263 = pneg %p153
        $region30: #{autoencoder_forward.1} parent=11 // pred_check_branch
          %265 = sbr.rel (%p263) target = $region32
        $region31: #{autoencoder_forward.1} parent=11 // pred_region
          _
        $region32: #{autoencoder_forward.1} parent=11 // pred_fallthru
          _
        // Predicated region
        $region33: #{autoencoder_forward.1} parent=11 // pred_check
          %p266 = pneg %p174
        $region34: #{autoencoder_forward.1} parent=11 // pred_check_branch
          %268 = sbr.rel (%p266) target = $region36
        $region35: #{autoencoder_forward.1} parent=11 // pred_region
          _
        $region36: #{autoencoder_forward.1} parent=11 // pred_fallthru
          _
      $region12: #{autoencoder_forward.1} parent=5 // pred_fallthru
        _
      %p269 = scmp.lt.s32.totalorder %s22, 2
      // Predicated region
      $region37: #{autoencoder_forward.1} parent=5 // pred_check
        %p270 = pneg %p269
      $region38: #{autoencoder_forward.1} parent=5 // pred_check_branch
        %272 = sbr.rel (%p270) target = $region40
      $region39: #{autoencoder_forward.1} parent=5 // pred_region
        // Predicated region
        $region41: #{autoencoder_forward.1} parent=39 // pred_check
          %p273 = pneg %p42
        $region42: #{autoencoder_forward.1} parent=39 // pred_check_branch
          %275 = sbr.rel (%p273) target = $region44
        $region43: #{autoencoder_forward.1} parent=39 // pred_region
          %s276 = sand.u32 %s32, 1
          %s277 = scalar_lea.sflag [#allocation3], %s276
          %s278 = sand.u32 %s32, 1
          %s279 = smul.addr %s278, 256
          %s280 = scalar_lea.vmem [#allocation2], %s279
          %s281 = smul.u32 16, %s22
          %s283 = ssub.s32 4096, 4096
          %284 = vsyncadd %s277, %s283
          %s285 = smul.addr %s281, 2
          %s286 = smul.addr %s285, 128
          %s287 = scalar_lea.hbm %s0, %s286
          %s288 = sshll.u32 %s280, 4
          %s289 = int_to_ptr.vmem [resolvable:$true] %s288
          %294 = dma.hbm_to_vmem [thread:$0]  %s287, 4096, %s289, %s277, 256, 256, 16
        $region44: #{autoencoder_forward.1} parent=39 // pred_fallthru
          _
      $region40: #{autoencoder_forward.1} parent=5 // pred_fallthru
        _
      %p295 = scmp.le.s32.totalorder 1, %s22
      %p296 = scmp.lt.s32.totalorder %s22, 3
      %p297 = pnand %p295, %p296
      %p298 = pneg %p297
      // Predicated region
      $region45: #{autoencoder_forward.1} parent=5 // pred_check
        _
      $region46: #{autoencoder_forward.1} parent=5 // pred_check_branch
        %300 = sbr.rel (%p297) target = $region48
      $region47: #{autoencoder_forward.1} parent=5 // pred_region
        %s301 = ssub.s32 %s22, 1
        %s302 = sand.u32 %s35, 1
        %s303 = scalar_lea.sflag [#allocation3], %s302
        %s304 = sand.u32 %s35, 1
        %s305 = smul.addr %s304, 256
        %s306 = scalar_lea.vmem [#allocation2], %s305
        // Predicated region
        $region49: #{autoencoder_forward.1} parent=47 // pred_check
          %p307 = pneg %p48
        $region50: #{autoencoder_forward.1} parent=47 // pred_check_branch
          %309 = sbr.rel (%p307) target = $region52
        $region51: #{autoencoder_forward.1} parent=47 // pred_region
          %310 = dma.done %s303, 4096
        $region52: #{autoencoder_forward.1} parent=47 // pred_fallthru
          _
        // Predicated region
        $region53: #{autoencoder_forward.1} parent=47 // pred_check
          %p311 = pneg %p69
        $region54: #{autoencoder_forward.1} parent=47 // pred_check_branch
          %313 = sbr.rel (%p311) target = $region56
        $region55: #{autoencoder_forward.1} parent=47 // pred_region
          %314 = dma.done [#allocation6], 4096
        $region56: #{autoencoder_forward.1} parent=47 // pred_fallthru
          _
        %s315 = sand.u32 %s35, 1
        %s316 = scalar_lea.sflag [#allocation3], %s315
        %s317 = sand.u32 %s35, 1
        %s318 = smul.addr %s317, 256
        %s319 = scalar_lea.vmem [#allocation2], %s318
        %p320 = pneg %p48
        %p321 = pneg %p45
        %p322 = pneg %p69
        %p323 = pneg %p66
        %p324 = pneg %p90
        %p325 = pneg %p87
        %p326 = pneg %p111
        %p327 = pneg %p108
        %p328 = pneg %p132
        %p329 = pneg %p129
        %p330 = pneg %p153
        %p331 = pneg %p150
        %p332 = pneg %p174
        %p333 = pneg %p171
        %p334 = pneg %p200
        %p335 = pneg %p197
        %s336 = smul.u32 16, %s27
        %p337 = scmp.lt.s32.totalorder %s336, 31
        %s338 = scalar_select %p337, %s336, 31
        %s339 = smul.addr %s338, 8
        %s340 = scalar_lea.vmem %s7, %s339
        %p341 = pneg %p226
        %p342 = pneg %p223
        %s343 = sand.u32 %s213, 1
        %s344 = scalar_lea.sflag [#allocation4], %s343
        %s345 = sand.u32 %s213, 1
        %s346 = smul.addr %s345, 256
        %s347 = scalar_lea.vmem [#allocation7], %s346
        %s348 = smul.u32 16, %s27
        %s349 = smul.u32 16, %s27
        %p350 = scmp.lt.s32.totalorder %s349, 31
        %s351 = scalar_select %p350, %s349, 31
        %s352 = smul.addr %s351, 8
        %s353 = scalar_lea.vmem %s7, %s352
        %s354 = smul.u32 16, %s27
        %s355 = smul.u32 16, %s27
        %v356 = vld [vmem:[%s306] sm:$0xff]
        %v357 = vld [vmem:[%s306 + $0x8] sm:$0xff]
        %v358 = vld [vmem:[%s306 + $0x10] sm:$0xff]
        %v359 = vld [vmem:[%s306 + $0x18] sm:$0xff]
        %v360 = vld [vmem:[%s306 + $0x20] sm:$0xff]
        %v361 = vld [vmem:[%s306 + $0x28] sm:$0xff]
        %v362 = vld [vmem:[%s306 + $0x30] sm:$0xff]
        %v363 = vld [vmem:[%s306 + $0x38] sm:$0xff]
        %v364 = vld [vmem:[%s306 + $0x40] sm:$0xff]
        %v365 = vld [vmem:[%s306 + $0x48] sm:$0xff]
        %v366 = vld [vmem:[%s306 + $0x50] sm:$0xff]
        %v367 = vld [vmem:[%s306 + $0x58] sm:$0xff]
        %v368 = vld [vmem:[%s306 + $0x60] sm:$0xff]
        %v369 = vld [vmem:[%s306 + $0x68] sm:$0xff]
        %v370 = vld [vmem:[%s306 + $0x70] sm:$0xff]
        %v371 = vld [vmem:[%s306 + $0x78] sm:$0xff]
        %v372 = vld [vmem:[%s306 + $0x80] sm:$0xff]
        %v373 = vld [vmem:[%s306 + $0x88] sm:$0xff]
        %v374 = vld [vmem:[%s306 + $0x90] sm:$0xff]
        %v375 = vld [vmem:[%s306 + $0x98] sm:$0xff]
        %v376 = vld [vmem:[%s306 + $0xa0] sm:$0xff]
        %v377 = vld [vmem:[%s306 + $0xa8] sm:$0xff]
        %v378 = vld [vmem:[%s306 + $0xb0] sm:$0xff]
        %v379 = vld [vmem:[%s306 + $0xb8] sm:$0xff]
        %v380 = vld [vmem:[%s306 + $0xc0] sm:$0xff]
        %v381 = vld [vmem:[%s306 + $0xc8] sm:$0xff]
        %v382 = vld [vmem:[%s306 + $0xd0] sm:$0xff]
        %v383 = vld [vmem:[%s306 + $0xd8] sm:$0xff]
        %v384 = vld [vmem:[%s306 + $0xe0] sm:$0xff]
        %v385 = vld [vmem:[%s306 + $0xe8] sm:$0xff]
        %v386 = vld [vmem:[%s306 + $0xf0] sm:$0xff]
        %v387 = vld [vmem:[%s306 + $0xf8] sm:$0xff]
        %v388 = vld [vmem:[#allocation5] sm:$0xff]
        %v389 = vld [vmem:[#allocation5 + $0x8] sm:$0xff]
        %v390 = vld [vmem:[#allocation5 + $0x10] sm:$0xff]
        %v391 = vld [vmem:[#allocation5 + $0x18] sm:$0xff]
        %v392 = vld [vmem:[#allocation5 + $0x20] sm:$0xff]
        %v393 = vld [vmem:[#allocation5 + $0x28] sm:$0xff]
        %v394 = vld [vmem:[#allocation5 + $0x30] sm:$0xff]
        %v395 = vld [vmem:[#allocation5 + $0x38] sm:$0xff]
        %v396 = vld [vmem:[#allocation5 + $0x40] sm:$0xff]
        %v397 = vld [vmem:[#allocation5 + $0x48] sm:$0xff]
        %v398 = vld [vmem:[#allocation5 + $0x50] sm:$0xff]
        %v399 = vld [vmem:[#allocation5 + $0x58] sm:$0xff]
        %v400 = vld [vmem:[#allocation5 + $0x60] sm:$0xff]
        %v401 = vld [vmem:[#allocation5 + $0x68] sm:$0xff]
        %v402 = vld [vmem:[#allocation5 + $0x70] sm:$0xff]
        %v403 = vld [vmem:[#allocation5 + $0x78] sm:$0xff]
        %v404 = vld [vmem:[#allocation5 + $0x80] sm:$0xff]
        %v405 = vld [vmem:[#allocation5 + $0x88] sm:$0xff]
        %v406 = vld [vmem:[#allocation5 + $0x90] sm:$0xff]
        %v407 = vld [vmem:[#allocation5 + $0x98] sm:$0xff]
        %v408 = vld [vmem:[#allocation5 + $0xa0] sm:$0xff]
        %v409 = vld [vmem:[#allocation5 + $0xa8] sm:$0xff]
        %v410 = vld [vmem:[#allocation5 + $0xb0] sm:$0xff]
        %v411 = vld [vmem:[#allocation5 + $0xb8] sm:$0xff]
        %v412 = vld [vmem:[#allocation5 + $0xc0] sm:$0xff]
        %v413 = vld [vmem:[#allocation5 + $0xc8] sm:$0xff]
        %v414 = vld [vmem:[#allocation5 + $0xd0] sm:$0xff]
        %v415 = vld [vmem:[#allocation5 + $0xd8] sm:$0xff]
        %v416 = vld [vmem:[#allocation5 + $0xe0] sm:$0xff]
        %v417 = vld [vmem:[#allocation5 + $0xe8] sm:$0xff]
        %v418 = vld [vmem:[#allocation5 + $0xf0] sm:$0xff]
        %v419 = vld [vmem:[#allocation5 + $0xf8] sm:$0xff]
        %v420 = vld [vmem:[%s3] sm:$0xff]
        %v421 = vld [vmem:[%s3 + $0x8] sm:$0xff]
        %v422 = vld [vmem:[%s3 + $0x10] sm:$0xff]
        %v423 = vld [vmem:[%s3 + $0x18] sm:$0xff]
        %v424 = vld [vmem:[%s3 + $0x20] sm:$0xff]
        %v425 = vld [vmem:[%s3 + $0x28] sm:$0xff]
        %v426 = vld [vmem:[%s3 + $0x30] sm:$0xff]
        %v427 = vld [vmem:[%s3 + $0x38] sm:$0xff]
        %v428 = vld [vmem:[%s3 + $0x40] sm:$0xff]
        %v429 = vld [vmem:[%s3 + $0x48] sm:$0xff]
        %v430 = vld [vmem:[%s3 + $0x50] sm:$0xff]
        %v431 = vld [vmem:[%s3 + $0x58] sm:$0xff]
        %v432 = vld [vmem:[%s3 + $0x60] sm:$0xff]
        %v433 = vld [vmem:[%s3 + $0x68] sm:$0xff]
        %v434 = vld [vmem:[%s3 + $0x70] sm:$0xff]
        %v435 = vld [vmem:[%s3 + $0x78] sm:$0xff]
        %v436 = vld [vmem:[%s2] sm:$0x1]
        %v437 = vld [vmem:[%s4] sm:$0x1]
        %v438 = vld [vmem:[%s5] sm:$0x1]
        %v439 = vld [vmem:[%s6] sm:$0x3]
        %v441 = vlaneseq
        %v442 = vshrl.u32 %v441, 7
        %v443 = vsub.s32 0, %v442
        %v444 = vrot.slane %v436, %v443
        %446 = vmatprep.subr.mxu0 %v419
        %447 = vmatpush1.xpose.msra.mxu0 %v418
        %448 = vmatprep.subr.mxu0 %v417
        %449 = vmatpush1.xpose.msra.mxu0 %v416
        %450 = vmatprep.subr.mxu0 %v415
        %451 = vmatpush1.xpose.msra.mxu0 %v414
        %452 = vmatprep.subr.mxu0 %v413
        %453 = vmatpush1.xpose.msra.mxu0 %v412
        %454 = vmatprep.subr.mxu0 %v411
        %455 = vmatpush1.xpose.msra.mxu0 %v410
        %456 = vmatprep.subr.mxu0 %v409
        %457 = vmatpush1.xpose.msra.mxu0 %v408
        %458 = vmatprep.subr.mxu0 %v407
        %459 = vmatpush1.xpose.msra.mxu0 %v406
        %460 = vmatprep.subr.mxu0 %v405
        %461 = vmatpush1.xpose.msra.mxu0 %v404
        %462 = vmatprep.subr.mxu0 %v403
        %463 = vmatpush1.xpose.msra.mxu0 %v402
        %464 = vmatprep.subr.mxu0 %v401
        %465 = vmatpush1.xpose.msra.mxu0 %v400
        %466 = vmatprep.subr.mxu0 %v399
        %467 = vmatpush1.xpose.msra.mxu0 %v398
        %468 = vmatprep.subr.mxu0 %v397
        %469 = vmatpush1.xpose.msra.mxu0 %v396
        %470 = vmatprep.subr.mxu0 %v395
        %471 = vmatpush1.xpose.msra.mxu0 %v394
        %472 = vmatprep.subr.mxu0 %v393
        %473 = vmatpush1.xpose.msra.mxu0 %v392
        %474 = vmatprep.subr.mxu0 %v391
        %475 = vmatpush1.xpose.msra.mxu0 %v390
        %476 = vmatprep.subr.mxu0 %v389
        %477 = vmatpush1.xpose.msra.mxu0 %v388
        %478 = vmatprep.subr.mxu0 0.0
        %479 = vmatpush2.xpose.msra.mxu0 0.0
        %480 = vmatprep.subr.mxu0 0.0
        %481 = vmatpush2.xpose.msra.mxu0 0.0
        %482 = vmatprep.subr.mxu0 0.0
        %483 = vmatpush2.xpose.msra.mxu0 0.0
        %484 = vmatprep.subr.mxu0 0.0
        %485 = vmatpush2.xpose.msra.mxu0 0.0
        %486 = vmatprep.subr.mxu0 0.0
        %487 = vmatpush2.xpose.msra.mxu0 0.0
        %488 = vmatprep.subr.mxu0 0.0
        %489 = vmatpush2.xpose.msra.mxu0 0.0
        %490 = vmatprep.subr.mxu0 0.0
        %491 = vmatpush2.xpose.msra.mxu0 0.0
        %492 = vmatprep.subr.mxu0 0.0
        %493 = vmatpush2.xpose.msra.mxu0 0.0
        %494 = vmatprep.subr.mxu0 0.0
        %495 = vmatpush2.xpose.msra.mxu0 0.0
        %496 = vmatprep.subr.mxu0 0.0
        %497 = vmatpush2.xpose.msra.mxu0 0.0
        %498 = vmatprep.subr.mxu0 0.0
        %499 = vmatpush2.xpose.msra.mxu0 0.0
        %500 = vmatprep.subr.mxu0 0.0
        %501 = vmatpush2.xpose.msra.mxu0 0.0
        %502 = vmatprep.subr.mxu0 0.0
        %503 = vmatpush2.xpose.msra.mxu0 0.0
        %504 = vmatprep.subr.mxu0 0.0
        %505 = vmatpush2.xpose.msra.mxu0 0.0
        %506 = vmatprep.subr.mxu0 0.0
        %507 = vmatpush2.xpose.msra.mxu0 0.0
        %508 = vmatprep.subr.mxu0 0.0
        %509 = vmatpush2.xpose.msra.mxu0 0.0
        %510 = vmatprep.mubr.f32.mxu0 %v357
        %511 = vmatmul.mubr.f32.gmra.mxu0 %v356
        %v512 = vpop.f32.mrf.mxu0
        %v513 = vadd.f32 %v444, %v512
        %v514 = vpop.f32.mrf.mxu0
        %515 = vmatprep.mubr.f32.mxu0 %v359
        %516 = vmatmul.mubr.f32.gmra.mxu0 %v358
        %v517 = vpop.f32.mrf.mxu0
        %v518 = vadd.f32 %v444, %v517
        %v519 = vpop.f32.mrf.mxu0
        %520 = vmatprep.mubr.f32.mxu0 %v361
        %521 = vmatmul.mubr.f32.gmra.mxu0 %v360
        %v522 = vpop.f32.mrf.mxu0
        %v523 = vadd.f32 %v444, %v522
        %v524 = vpop.f32.mrf.mxu0
        %525 = vmatprep.mubr.f32.mxu0 %v363
        %526 = vmatmul.mubr.f32.gmra.mxu0 %v362
        %v527 = vpop.f32.mrf.mxu0
        %v528 = vadd.f32 %v444, %v527
        %v529 = vpop.f32.mrf.mxu0
        %530 = vmatprep.mubr.f32.mxu0 %v365
        %531 = vmatmul.mubr.f32.gmra.mxu0 %v364
        %v532 = vpop.f32.mrf.mxu0
        %v533 = vadd.f32 %v444, %v532
        %v534 = vpop.f32.mrf.mxu0
        %535 = vmatprep.mubr.f32.mxu0 %v367
        %536 = vmatmul.mubr.f32.gmra.mxu0 %v366
        %v537 = vpop.f32.mrf.mxu0
        %v538 = vadd.f32 %v444, %v537
        %v539 = vpop.f32.mrf.mxu0
        %540 = vmatprep.mubr.f32.mxu0 %v369
        %541 = vmatmul.mubr.f32.gmra.mxu0 %v368
        %v542 = vpop.f32.mrf.mxu0
        %v543 = vadd.f32 %v444, %v542
        %v544 = vpop.f32.mrf.mxu0
        %545 = vmatprep.mubr.f32.mxu0 %v371
        %546 = vmatmul.mubr.f32.gmra.mxu0 %v370
        %v547 = vpop.f32.mrf.mxu0
        %v548 = vadd.f32 %v444, %v547
        %v549 = vpop.f32.mrf.mxu0
        %550 = vmatprep.mubr.f32.mxu0 %v373
        %551 = vmatmul.mubr.f32.gmra.mxu0 %v372
        %v552 = vpop.f32.mrf.mxu0
        %v553 = vadd.f32 %v444, %v552
        %v554 = vpop.f32.mrf.mxu0
        %555 = vmatprep.mubr.f32.mxu0 %v375
        %556 = vmatmul.mubr.f32.gmra.mxu0 %v374
        %v557 = vpop.f32.mrf.mxu0
        %v558 = vadd.f32 %v444, %v557
        %v559 = vpop.f32.mrf.mxu0
        %560 = vmatprep.mubr.f32.mxu0 %v377
        %561 = vmatmul.mubr.f32.gmra.mxu0 %v376
        %v562 = vpop.f32.mrf.mxu0
        %v563 = vadd.f32 %v444, %v562
        %v564 = vpop.f32.mrf.mxu0
        %565 = vmatprep.mubr.f32.mxu0 %v379
        %566 = vmatmul.mubr.f32.gmra.mxu0 %v378
        %v567 = vpop.f32.mrf.mxu0
        %v568 = vadd.f32 %v444, %v567
        %v569 = vpop.f32.mrf.mxu0
        %570 = vmatprep.mubr.f32.mxu0 %v381
        %571 = vmatmul.mubr.f32.gmra.mxu0 %v380
        %v572 = vpop.f32.mrf.mxu0
        %v573 = vadd.f32 %v444, %v572
        %v574 = vpop.f32.mrf.mxu0
        %575 = vmatprep.mubr.f32.mxu0 %v383
        %576 = vmatmul.mubr.f32.gmra.mxu0 %v382
        %v577 = vpop.f32.mrf.mxu0
        %v578 = vadd.f32 %v444, %v577
        %v579 = vpop.f32.mrf.mxu0
        %580 = vmatprep.mubr.f32.mxu0 %v385
        %581 = vmatmul.mubr.f32.gmra.mxu0 %v384
        %v582 = vpop.f32.mrf.mxu0
        %v583 = vadd.f32 %v444, %v582
        %v584 = vpop.f32.mrf.mxu0
        %585 = vmatprep.mubr.f32.mxu0 %v387
        %586 = vmatmul.mubr.f32.gmra.mxu0 %v386
        %v587 = vpop.f32.mrf.mxu0
        %v588 = vadd.f32 %v444, %v587
        %v589 = vpop.f32.mrf.mxu0
        %590 = vdwg.mxu0
        %v591 = vmax.f32 %v513, 0.0
        %v592 = vmax.f32 %v518, 0.0
        %v593 = vmax.f32 %v523, 0.0
        %v594 = vmax.f32 %v528, 0.0
        %v595 = vmax.f32 %v533, 0.0
        %v596 = vmax.f32 %v538, 0.0
        %v597 = vmax.f32 %v543, 0.0
        %v598 = vmax.f32 %v548, 0.0
        %v599 = vmax.f32 %v553, 0.0
        %v600 = vmax.f32 %v558, 0.0
        %v601 = vmax.f32 %v563, 0.0
        %v602 = vmax.f32 %v568, 0.0
        %v603 = vmax.f32 %v573, 0.0
        %v604 = vmax.f32 %v578, 0.0
        %v605 = vmax.f32 %v583, 0.0
        %v606 = vmax.f32 %v588, 0.0
        %v608 = vlaneseq
        %v609 = vshrl.u32 %v608, 7
        %v610 = vsub.s32 0, %v609
        %v611 = vrot.slane %v437, %v610
        %613 = vmatprep.subr.mxu0 0.0
        %614 = vmatpush1.xpose.msra.mxu0 %v435
        %615 = vmatprep.subr.mxu0 0.0
        %616 = vmatpush1.xpose.msra.mxu0 %v434
        %617 = vmatprep.subr.mxu0 0.0
        %618 = vmatpush1.xpose.msra.mxu0 %v433
        %619 = vmatprep.subr.mxu0 0.0
        %620 = vmatpush1.xpose.msra.mxu0 %v432
        %621 = vmatprep.subr.mxu0 0.0
        %622 = vmatpush1.xpose.msra.mxu0 %v431
        %623 = vmatprep.subr.mxu0 0.0
        %624 = vmatpush1.xpose.msra.mxu0 %v430
        %625 = vmatprep.subr.mxu0 0.0
        %626 = vmatpush1.xpose.msra.mxu0 %v429
        %627 = vmatprep.subr.mxu0 0.0
        %628 = vmatpush1.xpose.msra.mxu0 %v428
        %629 = vmatprep.subr.mxu0 0.0
        %630 = vmatpush1.xpose.msra.mxu0 %v427
        %631 = vmatprep.subr.mxu0 0.0
        %632 = vmatpush1.xpose.msra.mxu0 %v426
        %633 = vmatprep.subr.mxu0 0.0
        %634 = vmatpush1.xpose.msra.mxu0 %v425
        %635 = vmatprep.subr.mxu0 0.0
        %636 = vmatpush1.xpose.msra.mxu0 %v424
        %637 = vmatprep.subr.mxu0 0.0
        %638 = vmatpush1.xpose.msra.mxu0 %v423
        %639 = vmatprep.subr.mxu0 0.0
        %640 = vmatpush1.xpose.msra.mxu0 %v422
        %641 = vmatprep.subr.mxu0 0.0
        %642 = vmatpush1.xpose.msra.mxu0 %v421
        %643 = vmatprep.subr.mxu0 0.0
        %644 = vmatpush1.xpose.msra.mxu0 %v420
        %645 = vmatprep.subr.mxu0 0.0
        %646 = vmatpush2.xpose.msra.mxu0 0.0
        %647 = vmatprep.subr.mxu0 0.0
        %648 = vmatpush2.xpose.msra.mxu0 0.0
        %649 = vmatprep.subr.mxu0 0.0
        %650 = vmatpush2.xpose.msra.mxu0 0.0
        %651 = vmatprep.subr.mxu0 0.0
        %652 = vmatpush2.xpose.msra.mxu0 0.0
        %653 = vmatprep.subr.mxu0 0.0
        %654 = vmatpush2.xpose.msra.mxu0 0.0
        %655 = vmatprep.subr.mxu0 0.0
        %656 = vmatpush2.xpose.msra.mxu0 0.0
        %657 = vmatprep.subr.mxu0 0.0
        %658 = vmatpush2.xpose.msra.mxu0 0.0
        %659 = vmatprep.subr.mxu0 0.0
        %660 = vmatpush2.xpose.msra.mxu0 0.0
        %661 = vmatprep.subr.mxu0 0.0
        %662 = vmatpush2.xpose.msra.mxu0 0.0
        %663 = vmatprep.subr.mxu0 0.0
        %664 = vmatpush2.xpose.msra.mxu0 0.0
        %665 = vmatprep.subr.mxu0 0.0
        %666 = vmatpush2.xpose.msra.mxu0 0.0
        %667 = vmatprep.subr.mxu0 0.0
        %668 = vmatpush2.xpose.msra.mxu0 0.0
        %669 = vmatprep.subr.mxu0 0.0
        %670 = vmatpush2.xpose.msra.mxu0 0.0
        %671 = vmatprep.subr.mxu0 0.0
        %672 = vmatpush2.xpose.msra.mxu0 0.0
        %673 = vmatprep.subr.mxu0 0.0
        %674 = vmatpush2.xpose.msra.mxu0 0.0
        %675 = vmatprep.subr.mxu0 0.0
        %676 = vmatpush2.xpose.msra.mxu0 0.0
        %677 = vmatprep.mubr.f32.mxu0 0.0
        %678 = vmatmul.mubr.f32.gmra.mxu0 %v591
        %v679 = vpop.f32.mrf.mxu0
        %v680 = vadd.f32 %v611, %v679
        %v681 = vpop.f32.mrf.mxu0
        %682 = vmatprep.mubr.f32.mxu0 0.0
        %683 = vmatmul.mubr.f32.gmra.mxu0 %v592
        %v684 = vpop.f32.mrf.mxu0
        %v685 = vadd.f32 %v611, %v684
        %v686 = vpop.f32.mrf.mxu0
        %687 = vmatprep.mubr.f32.mxu0 0.0
        %688 = vmatmul.mubr.f32.gmra.mxu0 %v593
        %v689 = vpop.f32.mrf.mxu0
        %v690 = vadd.f32 %v611, %v689
        %v691 = vpop.f32.mrf.mxu0
        %692 = vmatprep.mubr.f32.mxu0 0.0
        %693 = vmatmul.mubr.f32.gmra.mxu0 %v594
        %v694 = vpop.f32.mrf.mxu0
        %v695 = vadd.f32 %v611, %v694
        %v696 = vpop.f32.mrf.mxu0
        %697 = vmatprep.mubr.f32.mxu0 0.0
        %698 = vmatmul.mubr.f32.gmra.mxu0 %v595
        %v699 = vpop.f32.mrf.mxu0
        %v700 = vadd.f32 %v611, %v699
        %v701 = vpop.f32.mrf.mxu0
        %702 = vmatprep.mubr.f32.mxu0 0.0
        %703 = vmatmul.mubr.f32.gmra.mxu0 %v596
        %v704 = vpop.f32.mrf.mxu0
        %v705 = vadd.f32 %v611, %v704
        %v706 = vpop.f32.mrf.mxu0
        %707 = vmatprep.mubr.f32.mxu0 0.0
        %708 = vmatmul.mubr.f32.gmra.mxu0 %v597
        %v709 = vpop.f32.mrf.mxu0
        %v710 = vadd.f32 %v611, %v709
        %v711 = vpop.f32.mrf.mxu0
        %712 = vmatprep.mubr.f32.mxu0 0.0
        %713 = vmatmul.mubr.f32.gmra.mxu0 %v598
        %v714 = vpop.f32.mrf.mxu0
        %v715 = vadd.f32 %v611, %v714
        %v716 = vpop.f32.mrf.mxu0
        %717 = vmatprep.mubr.f32.mxu0 0.0
        %718 = vmatmul.mubr.f32.gmra.mxu0 %v599
        %v719 = vpop.f32.mrf.mxu0
        %v720 = vadd.f32 %v611, %v719
        %v721 = vpop.f32.mrf.mxu0
        %722 = vmatprep.mubr.f32.mxu0 0.0
        %723 = vmatmul.mubr.f32.gmra.mxu0 %v600
        %v724 = vpop.f32.mrf.mxu0
        %v725 = vadd.f32 %v611, %v724
        %v726 = vpop.f32.mrf.mxu0
        %727 = vmatprep.mubr.f32.mxu0 0.0
        %728 = vmatmul.mubr.f32.gmra.mxu0 %v601
        %v729 = vpop.f32.mrf.mxu0
        %v730 = vadd.f32 %v611, %v729
        %v731 = vpop.f32.mrf.mxu0
        %732 = vmatprep.mubr.f32.mxu0 0.0
        %733 = vmatmul.mubr.f32.gmra.mxu0 %v602
        %v734 = vpop.f32.mrf.mxu0
        %v735 = vadd.f32 %v611, %v734
        %v736 = vpop.f32.mrf.mxu0
        %737 = vmatprep.mubr.f32.mxu0 0.0
        %738 = vmatmul.mubr.f32.gmra.mxu0 %v603
        %v739 = vpop.f32.mrf.mxu0
        %v740 = vadd.f32 %v611, %v739
        %v741 = vpop.f32.mrf.mxu0
        %742 = vmatprep.mubr.f32.mxu0 0.0
        %743 = vmatmul.mubr.f32.gmra.mxu0 %v604
        %v744 = vpop.f32.mrf.mxu0
        %v745 = vadd.f32 %v611, %v744
        %v746 = vpop.f32.mrf.mxu0
        %747 = vmatprep.mubr.f32.mxu0 0.0
        %748 = vmatmul.mubr.f32.gmra.mxu0 %v605
        %v749 = vpop.f32.mrf.mxu0
        %v750 = vadd.f32 %v611, %v749
        %v751 = vpop.f32.mrf.mxu0
        %752 = vmatprep.mubr.f32.mxu0 0.0
        %753 = vmatmul.mubr.f32.gmra.mxu0 %v606
        %v754 = vpop.f32.mrf.mxu0
        %v755 = vadd.f32 %v611, %v754
        %v756 = vpop.f32.mrf.mxu0
        %757 = vdwg.mxu0
        %v758 = vmax.f32 %v680, 0.0
        %v759 = vmax.f32 %v685, 0.0
        %v760 = vmax.f32 %v690, 0.0
        %v761 = vmax.f32 %v695, 0.0
        %v762 = vmax.f32 %v700, 0.0
        %v763 = vmax.f32 %v705, 0.0
        %v764 = vmax.f32 %v710, 0.0
        %v765 = vmax.f32 %v715, 0.0
        %v766 = vmax.f32 %v720, 0.0
        %v767 = vmax.f32 %v725, 0.0
        %v768 = vmax.f32 %v730, 0.0
        %v769 = vmax.f32 %v735, 0.0
        %v770 = vmax.f32 %v740, 0.0
        %v771 = vmax.f32 %v745, 0.0
        %v772 = vmax.f32 %v750, 0.0
        %v773 = vmax.f32 %v755, 0.0
        %v775 = vlaneseq
        %v776 = vshrl.u32 %v775, 7
        %v777 = vsub.s32 0, %v776
        %v778 = vrot.slane %v438, %v777
        %780 = vmatprep.subr.mxu0 0.0
        %781 = vmatpush1.msra.mxu0 %v435
        %782 = vmatprep.subr.mxu0 0.0
        %783 = vmatpush1.msra.mxu0 %v434
        %784 = vmatprep.subr.mxu0 0.0
        %785 = vmatpush1.msra.mxu0 %v433
        %786 = vmatprep.subr.mxu0 0.0
        %787 = vmatpush1.msra.mxu0 %v432
        %788 = vmatprep.subr.mxu0 0.0
        %789 = vmatpush1.msra.mxu0 %v431
        %790 = vmatprep.subr.mxu0 0.0
        %791 = vmatpush1.msra.mxu0 %v430
        %792 = vmatprep.subr.mxu0 0.0
        %793 = vmatpush1.msra.mxu0 %v429
        %794 = vmatprep.subr.mxu0 0.0
        %795 = vmatpush1.msra.mxu0 %v428
        %796 = vmatprep.subr.mxu0 0.0
        %797 = vmatpush1.msra.mxu0 %v427
        %798 = vmatprep.subr.mxu0 0.0
        %799 = vmatpush1.msra.mxu0 %v426
        %800 = vmatprep.subr.mxu0 0.0
        %801 = vmatpush1.msra.mxu0 %v425
        %802 = vmatprep.subr.mxu0 0.0
        %803 = vmatpush1.msra.mxu0 %v424
        %804 = vmatprep.subr.mxu0 0.0
        %805 = vmatpush1.msra.mxu0 %v423
        %806 = vmatprep.subr.mxu0 0.0
        %807 = vmatpush1.msra.mxu0 %v422
        %808 = vmatprep.subr.mxu0 0.0
        %809 = vmatpush1.msra.mxu0 %v421
        %810 = vmatprep.subr.mxu0 0.0
        %811 = vmatpush1.msra.mxu0 %v420
        %812 = vmatprep.subr.mxu0 0.0
        %813 = vmatpush2.msra.mxu0 0.0
        %814 = vmatprep.subr.mxu0 0.0
        %815 = vmatpush2.msra.mxu0 0.0
        %816 = vmatprep.subr.mxu0 0.0
        %817 = vmatpush2.msra.mxu0 0.0
        %818 = vmatprep.subr.mxu0 0.0
        %819 = vmatpush2.msra.mxu0 0.0
        %820 = vmatprep.subr.mxu0 0.0
        %821 = vmatpush2.msra.mxu0 0.0
        %822 = vmatprep.subr.mxu0 0.0
        %823 = vmatpush2.msra.mxu0 0.0
        %824 = vmatprep.subr.mxu0 0.0
        %825 = vmatpush2.msra.mxu0 0.0
        %826 = vmatprep.subr.mxu0 0.0
        %827 = vmatpush2.msra.mxu0 0.0
        %828 = vmatprep.subr.mxu0 0.0
        %829 = vmatpush2.msra.mxu0 0.0
        %830 = vmatprep.subr.mxu0 0.0
        %831 = vmatpush2.msra.mxu0 0.0
        %832 = vmatprep.subr.mxu0 0.0
        %833 = vmatpush2.msra.mxu0 0.0
        %834 = vmatprep.subr.mxu0 0.0
        %835 = vmatpush2.msra.mxu0 0.0
        %836 = vmatprep.subr.mxu0 0.0
        %837 = vmatpush2.msra.mxu0 0.0
        %838 = vmatprep.subr.mxu0 0.0
        %839 = vmatpush2.msra.mxu0 0.0
        %840 = vmatprep.subr.mxu0 0.0
        %841 = vmatpush2.msra.mxu0 0.0
        %842 = vmatprep.subr.mxu0 0.0
        %843 = vmatpush2.msra.mxu0 0.0
        %844 = vmatprep.mubr.f32.mxu0 0.0
        %845 = vmatmul.mubr.f32.gmra.mxu0 %v758
        %v846 = vpop.f32.mrf.mxu0
        %v847 = vadd.f32 %v778, %v846
        %v848 = vpop.f32.mrf.mxu0
        %849 = vmatprep.mubr.f32.mxu0 0.0
        %850 = vmatmul.mubr.f32.gmra.mxu0 %v759
        %v851 = vpop.f32.mrf.mxu0
        %v852 = vadd.f32 %v778, %v851
        %v853 = vpop.f32.mrf.mxu0
        %854 = vmatprep.mubr.f32.mxu0 0.0
        %855 = vmatmul.mubr.f32.gmra.mxu0 %v760
        %v856 = vpop.f32.mrf.mxu0
        %v857 = vadd.f32 %v778, %v856
        %v858 = vpop.f32.mrf.mxu0
        %859 = vmatprep.mubr.f32.mxu0 0.0
        %860 = vmatmul.mubr.f32.gmra.mxu0 %v761
        %v861 = vpop.f32.mrf.mxu0
        %v862 = vadd.f32 %v778, %v861
        %v863 = vpop.f32.mrf.mxu0
        %864 = vmatprep.mubr.f32.mxu0 0.0
        %865 = vmatmul.mubr.f32.gmra.mxu0 %v762
        %v866 = vpop.f32.mrf.mxu0
        %v867 = vadd.f32 %v778, %v866
        %v868 = vpop.f32.mrf.mxu0
        %869 = vmatprep.mubr.f32.mxu0 0.0
        %870 = vmatmul.mubr.f32.gmra.mxu0 %v763
        %v871 = vpop.f32.mrf.mxu0
        %v872 = vadd.f32 %v778, %v871
        %v873 = vpop.f32.mrf.mxu0
        %874 = vmatprep.mubr.f32.mxu0 0.0
        %875 = vmatmul.mubr.f32.gmra.mxu0 %v764
        %v876 = vpop.f32.mrf.mxu0
        %v877 = vadd.f32 %v778, %v876
        %v878 = vpop.f32.mrf.mxu0
        %879 = vmatprep.mubr.f32.mxu0 0.0
        %880 = vmatmul.mubr.f32.gmra.mxu0 %v765
        %v881 = vpop.f32.mrf.mxu0
        %v882 = vadd.f32 %v778, %v881
        %v883 = vpop.f32.mrf.mxu0
        %884 = vmatprep.mubr.f32.mxu0 0.0
        %885 = vmatmul.mubr.f32.gmra.mxu0 %v766
        %v886 = vpop.f32.mrf.mxu0
        %v887 = vadd.f32 %v778, %v886
        %v888 = vpop.f32.mrf.mxu0
        %889 = vmatprep.mubr.f32.mxu0 0.0
        %890 = vmatmul.mubr.f32.gmra.mxu0 %v767
        %v891 = vpop.f32.mrf.mxu0
        %v892 = vadd.f32 %v778, %v891
        %v893 = vpop.f32.mrf.mxu0
        %894 = vmatprep.mubr.f32.mxu0 0.0
        %895 = vmatmul.mubr.f32.gmra.mxu0 %v768
        %v896 = vpop.f32.mrf.mxu0
        %v897 = vadd.f32 %v778, %v896
        %v898 = vpop.f32.mrf.mxu0
        %899 = vmatprep.mubr.f32.mxu0 0.0
        %900 = vmatmul.mubr.f32.gmra.mxu0 %v769
        %v901 = vpop.f32.mrf.mxu0
        %v902 = vadd.f32 %v778, %v901
        %v903 = vpop.f32.mrf.mxu0
        %904 = vmatprep.mubr.f32.mxu0 0.0
        %905 = vmatmul.mubr.f32.gmra.mxu0 %v770
        %v906 = vpop.f32.mrf.mxu0
        %v907 = vadd.f32 %v778, %v906
        %v908 = vpop.f32.mrf.mxu0
        %909 = vmatprep.mubr.f32.mxu0 0.0
        %910 = vmatmul.mubr.f32.gmra.mxu0 %v771
        %v911 = vpop.f32.mrf.mxu0
        %v912 = vadd.f32 %v778, %v911
        %v913 = vpop.f32.mrf.mxu0
        %914 = vmatprep.mubr.f32.mxu0 0.0
        %915 = vmatmul.mubr.f32.gmra.mxu0 %v772
        %v916 = vpop.f32.mrf.mxu0
        %v917 = vadd.f32 %v778, %v916
        %v918 = vpop.f32.mrf.mxu0
        %919 = vmatprep.mubr.f32.mxu0 0.0
        %920 = vmatmul.mubr.f32.gmra.mxu0 %v773
        %v921 = vpop.f32.mrf.mxu0
        %v922 = vadd.f32 %v778, %v921
        %v923 = vpop.f32.mrf.mxu0
        %924 = vdwg.mxu0
        %v925 = vmax.f32 %v847, 0.0
        %v926 = vmax.f32 %v852, 0.0
        %v927 = vmax.f32 %v857, 0.0
        %v928 = vmax.f32 %v862, 0.0
        %v929 = vmax.f32 %v867, 0.0
        %v930 = vmax.f32 %v872, 0.0
        %v931 = vmax.f32 %v877, 0.0
        %v932 = vmax.f32 %v882, 0.0
        %v933 = vmax.f32 %v887, 0.0
        %v934 = vmax.f32 %v892, 0.0
        %v935 = vmax.f32 %v897, 0.0
        %v936 = vmax.f32 %v902, 0.0
        %v937 = vmax.f32 %v907, 0.0
        %v938 = vmax.f32 %v912, 0.0
        %v939 = vmax.f32 %v917, 0.0
        %v940 = vmax.f32 %v922, 0.0
        %v942 = vlaneseq
        %v943 = vshrl.u32 %v942, 7
        %v944 = vsub.s32 0, %v943
        %v945 = vrot.slane %v439, %v944
        %v946 = vlaneseq
        %v947 = vshrl.u32 %v946, 7
        %v948 = vsub.s32 1, %v947
        %v949 = vrot.slane %v439, %v948
        %952 = vmatprep.subr.mxu0 %v419
        %953 = vmatpush1.msra.mxu0 %v418
        %954 = vmatprep.subr.mxu0 %v417
        %955 = vmatpush1.msra.mxu0 %v416
        %956 = vmatprep.subr.mxu0 %v415
        %957 = vmatpush1.msra.mxu0 %v414
        %958 = vmatprep.subr.mxu0 %v413
        %959 = vmatpush1.msra.mxu0 %v412
        %960 = vmatprep.subr.mxu0 %v411
        %961 = vmatpush1.msra.mxu0 %v410
        %962 = vmatprep.subr.mxu0 %v409
        %963 = vmatpush1.msra.mxu0 %v408
        %964 = vmatprep.subr.mxu0 %v407
        %965 = vmatpush1.msra.mxu0 %v406
        %966 = vmatprep.subr.mxu0 %v405
        %967 = vmatpush1.msra.mxu0 %v404
        %968 = vmatprep.subr.mxu0 %v403
        %969 = vmatpush1.msra.mxu0 %v402
        %970 = vmatprep.subr.mxu0 %v401
        %971 = vmatpush1.msra.mxu0 %v400
        %972 = vmatprep.subr.mxu0 %v399
        %973 = vmatpush1.msra.mxu0 %v398
        %974 = vmatprep.subr.mxu0 %v397
        %975 = vmatpush1.msra.mxu0 %v396
        %976 = vmatprep.subr.mxu0 %v395
        %977 = vmatpush1.msra.mxu0 %v394
        %978 = vmatprep.subr.mxu0 %v393
        %979 = vmatpush1.msra.mxu0 %v392
        %980 = vmatprep.subr.mxu0 %v391
        %981 = vmatpush1.msra.mxu0 %v390
        %982 = vmatprep.subr.mxu0 %v389
        %983 = vmatpush1.msra.mxu0 %v388
        %984 = vmatprep.subr.mxu0 0.0
        %985 = vmatpush2.msra.mxu0 0.0
        %986 = vmatprep.subr.mxu0 0.0
        %987 = vmatpush2.msra.mxu0 0.0
        %988 = vmatprep.subr.mxu0 0.0
        %989 = vmatpush2.msra.mxu0 0.0
        %990 = vmatprep.subr.mxu0 0.0
        %991 = vmatpush2.msra.mxu0 0.0
        %992 = vmatprep.subr.mxu0 0.0
        %993 = vmatpush2.msra.mxu0 0.0
        %994 = vmatprep.subr.mxu0 0.0
        %995 = vmatpush2.msra.mxu0 0.0
        %996 = vmatprep.subr.mxu0 0.0
        %997 = vmatpush2.msra.mxu0 0.0
        %998 = vmatprep.subr.mxu0 0.0
        %999 = vmatpush2.msra.mxu0 0.0
        %1000 = vmatprep.subr.mxu0 0.0
        %1001 = vmatpush2.msra.mxu0 0.0
        %1002 = vmatprep.subr.mxu0 0.0
        %1003 = vmatpush2.msra.mxu0 0.0
        %1004 = vmatprep.subr.mxu0 0.0
        %1005 = vmatpush2.msra.mxu0 0.0
        %1006 = vmatprep.subr.mxu0 0.0
        %1007 = vmatpush2.msra.mxu0 0.0
        %1008 = vmatprep.subr.mxu0 0.0
        %1009 = vmatpush2.msra.mxu0 0.0
        %1010 = vmatprep.subr.mxu0 0.0
        %1011 = vmatpush2.msra.mxu0 0.0
        %1012 = vmatprep.subr.mxu0 0.0
        %1013 = vmatpush2.msra.mxu0 0.0
        %1014 = vmatprep.subr.mxu0 0.0
        %1015 = vmatpush2.msra.mxu0 0.0
        %1016 = vmatprep.mubr.f32.mxu0 0.0
        %1017 = vmatmul.mubr.f32.gmra.mxu0 %v925
        %v1018 = vpop.f32.mrf.mxu0
        %v1019 = vadd.f32 %v945, %v1018
        %v1020 = vpop.f32.mrf.mxu0
        %v1021 = vadd.f32 %v949, %v1020
        %1022 = vmatprep.mubr.f32.mxu0 0.0
        %1023 = vmatmul.mubr.f32.gmra.mxu0 %v926
        %v1024 = vpop.f32.mrf.mxu0
        %v1025 = vadd.f32 %v945, %v1024
        %v1026 = vpop.f32.mrf.mxu0
        %v1027 = vadd.f32 %v949, %v1026
        %1028 = vmatprep.mubr.f32.mxu0 0.0
        %1029 = vmatmul.mubr.f32.gmra.mxu0 %v927
        %v1030 = vpop.f32.mrf.mxu0
        %v1031 = vadd.f32 %v945, %v1030
        %v1032 = vpop.f32.mrf.mxu0
        %v1033 = vadd.f32 %v949, %v1032
        %1034 = vmatprep.mubr.f32.mxu0 0.0
        %1035 = vmatmul.mubr.f32.gmra.mxu0 %v928
        %v1036 = vpop.f32.mrf.mxu0
        %v1037 = vadd.f32 %v945, %v1036
        %v1038 = vpop.f32.mrf.mxu0
        %v1039 = vadd.f32 %v949, %v1038
        %1040 = vmatprep.mubr.f32.mxu0 0.0
        %1041 = vmatmul.mubr.f32.gmra.mxu0 %v929
        %v1042 = vpop.f32.mrf.mxu0
        %v1043 = vadd.f32 %v945, %v1042
        %v1044 = vpop.f32.mrf.mxu0
        %v1045 = vadd.f32 %v949, %v1044
        %1046 = vmatprep.mubr.f32.mxu0 0.0
        %1047 = vmatmul.mubr.f32.gmra.mxu0 %v930
        %v1048 = vpop.f32.mrf.mxu0
        %v1049 = vadd.f32 %v945, %v1048
        %v1050 = vpop.f32.mrf.mxu0
        %v1051 = vadd.f32 %v949, %v1050
        %1052 = vmatprep.mubr.f32.mxu0 0.0
        %1053 = vmatmul.mubr.f32.gmra.mxu0 %v931
        %v1054 = vpop.f32.mrf.mxu0
        %v1055 = vadd.f32 %v945, %v1054
        %v1056 = vpop.f32.mrf.mxu0
        %v1057 = vadd.f32 %v949, %v1056
        %1058 = vmatprep.mubr.f32.mxu0 0.0
        %1059 = vmatmul.mubr.f32.gmra.mxu0 %v932
        %v1060 = vpop.f32.mrf.mxu0
        %v1061 = vadd.f32 %v945, %v1060
        %v1062 = vpop.f32.mrf.mxu0
        %v1063 = vadd.f32 %v949, %v1062
        %1064 = vmatprep.mubr.f32.mxu0 0.0
        %1065 = vmatmul.mubr.f32.gmra.mxu0 %v933
        %v1066 = vpop.f32.mrf.mxu0
        %v1067 = vadd.f32 %v945, %v1066
        %v1068 = vpop.f32.mrf.mxu0
        %v1069 = vadd.f32 %v949, %v1068
        %1070 = vmatprep.mubr.f32.mxu0 0.0
        %1071 = vmatmul.mubr.f32.gmra.mxu0 %v934
        %v1072 = vpop.f32.mrf.mxu0
        %v1073 = vadd.f32 %v945, %v1072
        %v1074 = vpop.f32.mrf.mxu0
        %v1075 = vadd.f32 %v949, %v1074
        %1076 = vmatprep.mubr.f32.mxu0 0.0
        %1077 = vmatmul.mubr.f32.gmra.mxu0 %v935
        %v1078 = vpop.f32.mrf.mxu0
        %v1079 = vadd.f32 %v945, %v1078
        %v1080 = vpop.f32.mrf.mxu0
        %v1081 = vadd.f32 %v949, %v1080
        %1082 = vmatprep.mubr.f32.mxu0 0.0
        %1083 = vmatmul.mubr.f32.gmra.mxu0 %v936
        %v1084 = vpop.f32.mrf.mxu0
        %v1085 = vadd.f32 %v945, %v1084
        %v1086 = vpop.f32.mrf.mxu0
        %v1087 = vadd.f32 %v949, %v1086
        %1088 = vmatprep.mubr.f32.mxu0 0.0
        %1089 = vmatmul.mubr.f32.gmra.mxu0 %v937
        %v1090 = vpop.f32.mrf.mxu0
        %v1091 = vadd.f32 %v945, %v1090
        %v1092 = vpop.f32.mrf.mxu0
        %v1093 = vadd.f32 %v949, %v1092
        %1094 = vmatprep.mubr.f32.mxu0 0.0
        %1095 = vmatmul.mubr.f32.gmra.mxu0 %v938
        %v1096 = vpop.f32.mrf.mxu0
        %v1097 = vadd.f32 %v945, %v1096
        %v1098 = vpop.f32.mrf.mxu0
        %v1099 = vadd.f32 %v949, %v1098
        %1100 = vmatprep.mubr.f32.mxu0 0.0
        %1101 = vmatmul.mubr.f32.gmra.mxu0 %v939
        %v1102 = vpop.f32.mrf.mxu0
        %v1103 = vadd.f32 %v945, %v1102
        %v1104 = vpop.f32.mrf.mxu0
        %v1105 = vadd.f32 %v949, %v1104
        %1106 = vmatprep.mubr.f32.mxu0 0.0
        %1107 = vmatmul.mubr.f32.gmra.mxu0 %v940
        %v1108 = vpop.f32.mrf.mxu0
        %v1109 = vadd.f32 %v945, %v1108
        %v1110 = vpop.f32.mrf.mxu0
        %v1111 = vadd.f32 %v949, %v1110
        %1112 = vdwg.mxu0
        %v1113 = vxor.u32 %v1019, 2147483648
        %v1114 = vxor.u32 %v1021, 2147483648
        %v1115 = vxor.u32 %v1025, 2147483648
        %v1116 = vxor.u32 %v1027, 2147483648
        %v1117 = vxor.u32 %v1031, 2147483648
        %v1118 = vxor.u32 %v1033, 2147483648
        %v1119 = vxor.u32 %v1037, 2147483648
        %v1120 = vxor.u32 %v1039, 2147483648
        %v1121 = vxor.u32 %v1043, 2147483648
        %v1122 = vxor.u32 %v1045, 2147483648
        %v1123 = vxor.u32 %v1049, 2147483648
        %v1124 = vxor.u32 %v1051, 2147483648
        %v1125 = vxor.u32 %v1055, 2147483648
        %v1126 = vxor.u32 %v1057, 2147483648
        %v1127 = vxor.u32 %v1061, 2147483648
        %v1128 = vxor.u32 %v1063, 2147483648
        %v1129 = vxor.u32 %v1067, 2147483648
        %v1130 = vxor.u32 %v1069, 2147483648
        %v1131 = vxor.u32 %v1073, 2147483648
        %v1132 = vxor.u32 %v1075, 2147483648
        %v1133 = vxor.u32 %v1079, 2147483648
        %v1134 = vxor.u32 %v1081, 2147483648
        %v1135 = vxor.u32 %v1085, 2147483648
        %v1136 = vxor.u32 %v1087, 2147483648
        %v1137 = vxor.u32 %v1091, 2147483648
        %v1138 = vxor.u32 %v1093, 2147483648
        %v1139 = vxor.u32 %v1097, 2147483648
        %v1140 = vxor.u32 %v1099, 2147483648
        %v1141 = vxor.u32 %v1103, 2147483648
        %v1142 = vxor.u32 %v1105, 2147483648
        %v1143 = vxor.u32 %v1109, 2147483648
        %v1144 = vxor.u32 %v1111, 2147483648
        %v1145 = vmul.f32 %v1113, 1.442695
        %v1146 = vpow.pop %v1145
        %v1147 = vmul.f32 %v1114, 1.442695
        %v1148 = vpow.pop %v1147
        %v1149 = vmul.f32 %v1115, 1.442695
        %v1150 = vpow.pop %v1149
        %v1151 = vmul.f32 %v1116, 1.442695
        %v1152 = vpow.pop %v1151
        %v1153 = vmul.f32 %v1117, 1.442695
        %v1154 = vpow.pop %v1153
        %v1155 = vmul.f32 %v1118, 1.442695
        %v1156 = vpow.pop %v1155
        %v1157 = vmul.f32 %v1119, 1.442695
        %v1158 = vpow.pop %v1157
        %v1159 = vmul.f32 %v1120, 1.442695
        %v1160 = vpow.pop %v1159
        %v1161 = vmul.f32 %v1121, 1.442695
        %v1162 = vpow.pop %v1161
        %v1163 = vmul.f32 %v1122, 1.442695
        %v1164 = vpow.pop %v1163
        %v1165 = vmul.f32 %v1123, 1.442695
        %v1166 = vpow.pop %v1165
        %v1167 = vmul.f32 %v1124, 1.442695
        %v1168 = vpow.pop %v1167
        %v1169 = vmul.f32 %v1125, 1.442695
        %v1170 = vpow.pop %v1169
        %v1171 = vmul.f32 %v1126, 1.442695
        %v1172 = vpow.pop %v1171
        %v1173 = vmul.f32 %v1127, 1.442695
        %v1174 = vpow.pop %v1173
        %v1175 = vmul.f32 %v1128, 1.442695
        %v1176 = vpow.pop %v1175
        %v1177 = vmul.f32 %v1129, 1.442695
        %v1178 = vpow.pop %v1177
        %v1179 = vmul.f32 %v1130, 1.442695
        %v1180 = vpow.pop %v1179
        %v1181 = vmul.f32 %v1131, 1.442695
        %v1182 = vpow.pop %v1181
        %v1183 = vmul.f32 %v1132, 1.442695
        %v1184 = vpow.pop %v1183
        %v1185 = vmul.f32 %v1133, 1.442695
        %v1186 = vpow.pop %v1185
        %v1187 = vmul.f32 %v1134, 1.442695
        %v1188 = vpow.pop %v1187
        %v1189 = vmul.f32 %v1135, 1.442695
        %v1190 = vpow.pop %v1189
        %v1191 = vmul.f32 %v1136, 1.442695
        %v1192 = vpow.pop %v1191
        %v1193 = vmul.f32 %v1137, 1.442695
        %v1194 = vpow.pop %v1193
        %v1195 = vmul.f32 %v1138, 1.442695
        %v1196 = vpow.pop %v1195
        %v1197 = vmul.f32 %v1139, 1.442695
        %v1198 = vpow.pop %v1197
        %v1199 = vmul.f32 %v1140, 1.442695
        %v1200 = vpow.pop %v1199
        %v1201 = vmul.f32 %v1141, 1.442695
        %v1202 = vpow.pop %v1201
        %v1203 = vmul.f32 %v1142, 1.442695
        %v1204 = vpow.pop %v1203
        %v1205 = vmul.f32 %v1143, 1.442695
        %v1206 = vpow.pop %v1205
        %v1207 = vmul.f32 %v1144, 1.442695
        %v1208 = vpow.pop %v1207
        %v1209 = vadd.f32 %v1146, 1.0
        %v1210 = vadd.f32 %v1148, 1.0
        %v1211 = vadd.f32 %v1150, 1.0
        %v1212 = vadd.f32 %v1152, 1.0
        %v1213 = vadd.f32 %v1154, 1.0
        %v1214 = vadd.f32 %v1156, 1.0
        %v1215 = vadd.f32 %v1158, 1.0
        %v1216 = vadd.f32 %v1160, 1.0
        %v1217 = vadd.f32 %v1162, 1.0
        %v1218 = vadd.f32 %v1164, 1.0
        %v1219 = vadd.f32 %v1166, 1.0
        %v1220 = vadd.f32 %v1168, 1.0
        %v1221 = vadd.f32 %v1170, 1.0
        %v1222 = vadd.f32 %v1172, 1.0
        %v1223 = vadd.f32 %v1174, 1.0
        %v1224 = vadd.f32 %v1176, 1.0
        %v1225 = vadd.f32 %v1178, 1.0
        %v1226 = vadd.f32 %v1180, 1.0
        %v1227 = vadd.f32 %v1182, 1.0
        %v1228 = vadd.f32 %v1184, 1.0
        %v1229 = vadd.f32 %v1186, 1.0
        %v1230 = vadd.f32 %v1188, 1.0
        %v1231 = vadd.f32 %v1190, 1.0
        %v1232 = vadd.f32 %v1192, 1.0
        %v1233 = vadd.f32 %v1194, 1.0
        %v1234 = vadd.f32 %v1196, 1.0
        %v1235 = vadd.f32 %v1198, 1.0
        %v1236 = vadd.f32 %v1200, 1.0
        %v1237 = vadd.f32 %v1202, 1.0
        %v1238 = vadd.f32 %v1204, 1.0
        %v1239 = vadd.f32 %v1206, 1.0
        %v1240 = vadd.f32 %v1208, 1.0
        %v1241 = vrcp.pop %v1209
        %v1242 = vmul.f32 1.0, %v1241
        %v1243 = vrcp.pop %v1210
        %v1244 = vmul.f32 1.0, %v1243
        %v1245 = vrcp.pop %v1211
        %v1246 = vmul.f32 1.0, %v1245
        %v1247 = vrcp.pop %v1212
        %v1248 = vmul.f32 1.0, %v1247
        %v1249 = vrcp.pop %v1213
        %v1250 = vmul.f32 1.0, %v1249
        %v1251 = vrcp.pop %v1214
        %v1252 = vmul.f32 1.0, %v1251
        %v1253 = vrcp.pop %v1215
        %v1254 = vmul.f32 1.0, %v1253
        %v1255 = vrcp.pop %v1216
        %v1256 = vmul.f32 1.0, %v1255
        %v1257 = vrcp.pop %v1217
        %v1258 = vmul.f32 1.0, %v1257
        %v1259 = vrcp.pop %v1218
        %v1260 = vmul.f32 1.0, %v1259
        %v1261 = vrcp.pop %v1219
        %v1262 = vmul.f32 1.0, %v1261
        %v1263 = vrcp.pop %v1220
        %v1264 = vmul.f32 1.0, %v1263
        %v1265 = vrcp.pop %v1221
        %v1266 = vmul.f32 1.0, %v1265
        %v1267 = vrcp.pop %v1222
        %v1268 = vmul.f32 1.0, %v1267
        %v1269 = vrcp.pop %v1223
        %v1270 = vmul.f32 1.0, %v1269
        %v1271 = vrcp.pop %v1224
        %v1272 = vmul.f32 1.0, %v1271
        %v1273 = vrcp.pop %v1225
        %v1274 = vmul.f32 1.0, %v1273
        %v1275 = vrcp.pop %v1226
        %v1276 = vmul.f32 1.0, %v1275
        %v1277 = vrcp.pop %v1227
        %v1278 = vmul.f32 1.0, %v1277
        %v1279 = vrcp.pop %v1228
        %v1280 = vmul.f32 1.0, %v1279
        %v1281 = vrcp.pop %v1229
        %v1282 = vmul.f32 1.0, %v1281
        %v1283 = vrcp.pop %v1230
        %v1284 = vmul.f32 1.0, %v1283
        %v1285 = vrcp.pop %v1231
        %v1286 = vmul.f32 1.0, %v1285
        %v1287 = vrcp.pop %v1232
        %v1288 = vmul.f32 1.0, %v1287
        %v1289 = vrcp.pop %v1233
        %v1290 = vmul.f32 1.0, %v1289
        %v1291 = vrcp.pop %v1234
        %v1292 = vmul.f32 1.0, %v1291
        %v1293 = vrcp.pop %v1235
        %v1294 = vmul.f32 1.0, %v1293
        %v1295 = vrcp.pop %v1236
        %v1296 = vmul.f32 1.0, %v1295
        %v1297 = vrcp.pop %v1237
        %v1298 = vmul.f32 1.0, %v1297
        %v1299 = vrcp.pop %v1238
        %v1300 = vmul.f32 1.0, %v1299
        %v1301 = vrcp.pop %v1239
        %v1302 = vmul.f32 1.0, %v1301
        %v1303 = vrcp.pop %v1240
        %v1304 = vmul.f32 1.0, %v1303
        %1305 = vst [vmem:[%s353] sm:$0xff] %v758
        %1306 = vst [vmem:[%s353 + $0x8] sm:$0xff] %v759
        %1307 = vst [vmem:[%s353 + $0x10] sm:$0xff] %v760
        %1308 = vst [vmem:[%s353 + $0x18] sm:$0xff] %v761
        %1309 = vst [vmem:[%s353 + $0x20] sm:$0xff] %v762
        %1310 = vst [vmem:[%s353 + $0x28] sm:$0xff] %v763
        %1311 = vst [vmem:[%s353 + $0x30] sm:$0xff] %v764
        %1312 = vst [vmem:[%s353 + $0x38] sm:$0xff] %v765
        %1313 = vst [vmem:[%s353 + $0x40] sm:$0xff] %v766
        %1314 = vst [vmem:[%s353 + $0x48] sm:$0xff] %v767
        %1315 = vst [vmem:[%s353 + $0x50] sm:$0xff] %v768
        %1316 = vst [vmem:[%s353 + $0x58] sm:$0xff] %v769
        %1317 = vst [vmem:[%s353 + $0x60] sm:$0xff] %v770
        %1318 = vst [vmem:[%s353 + $0x68] sm:$0xff] %v771
        %1319 = vst [vmem:[%s353 + $0x70] sm:$0xff] %v772
        %1320 = vst [vmem:[%s353 + $0x78] sm:$0xff] %v773
        %1321 = vst [vmem:[%s347] sm:$0xff] %v1242
        %1322 = vst [vmem:[%s347 + $0x8] sm:$0xff] %v1244
        %1323 = vst [vmem:[%s347 + $0x10] sm:$0xff] %v1246
        %1324 = vst [vmem:[%s347 + $0x18] sm:$0xff] %v1248
        %1325 = vst [vmem:[%s347 + $0x20] sm:$0xff] %v1250
        %1326 = vst [vmem:[%s347 + $0x28] sm:$0xff] %v1252
        %1327 = vst [vmem:[%s347 + $0x30] sm:$0xff] %v1254
        %1328 = vst [vmem:[%s347 + $0x38] sm:$0xff] %v1256
        %1329 = vst [vmem:[%s347 + $0x40] sm:$0xff] %v1258
        %1330 = vst [vmem:[%s347 + $0x48] sm:$0xff] %v1260
        %1331 = vst [vmem:[%s347 + $0x50] sm:$0xff] %v1262
        %1332 = vst [vmem:[%s347 + $0x58] sm:$0xff] %v1264
        %1333 = vst [vmem:[%s347 + $0x60] sm:$0xff] %v1266
        %1334 = vst [vmem:[%s347 + $0x68] sm:$0xff] %v1268
        %1335 = vst [vmem:[%s347 + $0x70] sm:$0xff] %v1270
        %1336 = vst [vmem:[%s347 + $0x78] sm:$0xff] %v1272
        %1337 = vst [vmem:[%s347 + $0x80] sm:$0xff] %v1274
        %1338 = vst [vmem:[%s347 + $0x88] sm:$0xff] %v1276
        %1339 = vst [vmem:[%s347 + $0x90] sm:$0xff] %v1278
        %1340 = vst [vmem:[%s347 + $0x98] sm:$0xff] %v1280
        %1341 = vst [vmem:[%s347 + $0xa0] sm:$0xff] %v1282
        %1342 = vst [vmem:[%s347 + $0xa8] sm:$0xff] %v1284
        %1343 = vst [vmem:[%s347 + $0xb0] sm:$0xff] %v1286
        %1344 = vst [vmem:[%s347 + $0xb8] sm:$0xff] %v1288
        %1345 = vst [vmem:[%s347 + $0xc0] sm:$0xff] %v1290
        %1346 = vst [vmem:[%s347 + $0xc8] sm:$0xff] %v1292
        %1347 = vst [vmem:[%s347 + $0xd0] sm:$0xff] %v1294
        %1348 = vst [vmem:[%s347 + $0xd8] sm:$0xff] %v1296
        %1349 = vst [vmem:[%s347 + $0xe0] sm:$0xff] %v1298
        %1350 = vst [vmem:[%s347 + $0xe8] sm:$0xff] %v1300
        %1351 = vst [vmem:[%s347 + $0xf0] sm:$0xff] %v1302
        %1352 = vst [vmem:[%s347 + $0xf8] sm:$0xff] %v1304
        %s1353 = smul.u32 16, %s27
        %p1354 = scmp.lt.s32.totalorder %s1353, 31
        %s1355 = scalar_select %p1354, %s1353, 31
        %s1356 = smul.addr %s1355, 8
        %s1357 = scalar_lea.vmem %s7, %s1356
        %s1358 = sand.u32 %s213, 1
        %s1359 = scalar_lea.sflag [#allocation4], %s1358
        %s1360 = sand.u32 %s213, 1
        %s1361 = smul.addr %s1360, 256
        %s1362 = scalar_lea.vmem [#allocation7], %s1361
        // Predicated region
        $region57: #{autoencoder_forward.1} parent=47 // pred_check
          %p1363 = pneg %p197
        $region58: #{autoencoder_forward.1} parent=47 // pred_check_branch
          %1365 = sbr.rel (%p1363) target = $region60
        $region59: #{autoencoder_forward.1} parent=47 // pred_region
          %s1366 = smul.u32 16, %s27
        $region60: #{autoencoder_forward.1} parent=47 // pred_fallthru
          _
        // Predicated region
        $region61: #{autoencoder_forward.1} parent=47 // pred_check
          %p1367 = pneg %p223
        $region62: #{autoencoder_forward.1} parent=47 // pred_check_branch
          %1369 = sbr.rel (%p1367) target = $region64
        $region63: #{autoencoder_forward.1} parent=47 // pred_region
          %s1370 = smul.u32 16, %s27
          %s1372 = ssub.s32 4096, 4096
          %1373 = vsyncadd %s1359, %s1372
          %s1374 = smul.addr %s1370, 2
          %s1375 = smul.addr %s1374, 128
          %s1376 = scalar_lea.hbm %s8, %s1375
          %s1377 = sshll.u32 %s1362, 4
          %s1378 = int_to_ptr.vmem [resolvable:$true] %s1377
          %1383 = dma.vmem_to_hbm [thread:$0]  %s1378, 4096, %s1376, %s1359, 256, 256, 16
        $region64: #{autoencoder_forward.1} parent=47 // pred_fallthru
          _
      $region48: #{autoencoder_forward.1} parent=5 // pred_fallthru
        _
      %p1384 = scmp.le.s32.totalorder 2, %s22
      // Predicated region
      $region65: #{autoencoder_forward.1} parent=5 // pred_check
        %p1385 = pneg %p1384
      $region66: #{autoencoder_forward.1} parent=5 // pred_check_branch
        %1387 = sbr.rel (%p1385) target = $region68
      $region67: #{autoencoder_forward.1} parent=5 // pred_region
        %s1388 = ssub.s32 %s22, 2
        // Predicated region
        $region69: #{autoencoder_forward.1} parent=67 // pred_check
          %p1389 = pneg %p203
        $region70: #{autoencoder_forward.1} parent=67 // pred_check_branch
          %1391 = sbr.rel (%p1389) target = $region72
        $region71: #{autoencoder_forward.1} parent=67 // pred_region
          %s1392 = smul.u32 16, %s28
          %p1393 = scmp.lt.s32.totalorder %s1392, 31
          %s1394 = scalar_select %p1393, %s1392, 31
          %s1395 = smul.addr %s1394, 8
          %s1396 = scalar_lea.vmem %s7, %s1395
        $region72: #{autoencoder_forward.1} parent=67 // pred_fallthru
          _
        // Predicated region
        $region73: #{autoencoder_forward.1} parent=67 // pred_check
          %p1397 = pneg %p229
        $region74: #{autoencoder_forward.1} parent=67 // pred_check_branch
          %1399 = sbr.rel (%p1397) target = $region76
        $region75: #{autoencoder_forward.1} parent=67 // pred_region
          %s1400 = sand.u32 %s214, 1
          %s1401 = scalar_lea.sflag [#allocation4], %s1400
          %s1402 = sand.u32 %s214, 1
          %s1403 = smul.addr %s1402, 256
          %s1404 = scalar_lea.vmem [#allocation7], %s1403
          %1405 = dma.done %s1401, 4096
        $region76: #{autoencoder_forward.1} parent=67 // pred_fallthru
          _
      $region68: #{autoencoder_forward.1} parent=5 // pred_fallthru
        _
    $region6: #{autoencoder_forward.1} parent=1 // loop_footer
      %s26 = sadd.s32 1, %s22
    $region7: #{autoencoder_forward.1} parent=1 // loop_footer_branch
      %21 = sbr.rel target = $region3
    $region8: #{autoencoder_forward.1} parent=1 // loop_exit
      _
    %1406 = vsyncpa [#allocation3], 1
    %s1407 = scalar_lea.sflag [#allocation3], 1
    %1408 = vsyncpa %s1407, 1
    %1409 = vsyncpa [#allocation6], 1
    %1410 = vsyncpa [#allocation4], 1
    %s1411 = scalar_lea.sflag [#allocation4], 1
    %1412 = vsyncpa %s1411, 1

</llo_original>
